<compile_context>
chip_gen: v6e
topology: v6e:2x2x1
jax: 0.10.0
libtpu: 0.0.40
codegen_flags: <defaults>
</compile_context>

<pallas_src>
import functools

import jax
import jax.numpy as jnp
from jax.experimental import pallas as pl
from jax.experimental.pallas import tpu as pltpu

KSIZE = 7
PAD = KSIZE // 2  # padding for kernel_size=7


def _conv_sigmoid(avg, mx, w_ref, mask_ref, W):
    """sigmoid(7x7 zero-padded cross-correlation over the two pooled maps).

    avg, mx:  (B, HWp) f32 flattened pooled maps.
    w_ref:    SMEM (2*49,) f32 conv weights (avg taps first, then max taps).
    mask_ref: VMEM (14, HWp) 0/1 validity masks (7 column offsets, 7 row offsets).
    """
    n = avg.shape[-1]
    lane_axis = avg.ndim - 1

    # 7 column-shifted copies of each pooled map (shared by all 7 row taps).
    # pltpu.roll is a circular lane rotation; the column mask zeroes the lanes
    # where the 7-wide window would wrap across a row edge or into the lane
    # padding (reproducing the conv's zero padding horizontally).
    avg_c, mx_c = [], []
    for kj in range(KSIZE):
        s = kj - PAD
        cm = mask_ref[kj:kj + 1, :]                      # (1, HWp)
        if s == 0:
            a, m = avg, mx
        else:
            sh = (-s) % n                                 # out[b] = in[b + s]
            a = pltpu.roll(avg, sh, axis=lane_axis)
            m = pltpu.roll(mx, sh, axis=lane_axis)
        avg_c.append(a * cm)
        mx_c.append(m * cm)

    # Fully unrolled 7x7 MAC.  Two partial accumulators per row tap (VALU ILP),
    # then one lane rotation by (ki-PAD)*W; the row mask zeroes contributions
    # from rows outside the map (conv zero padding vertically).
    conv = None
    for ki in range(KSIZE):
        a0 = w_ref[ki * KSIZE + 0] * avg_c[0]
        a1 = w_ref[KSIZE * KSIZE + ki * KSIZE + 0] * mx_c[0]
        for kj in range(1, KSIZE):
            a0 = a0 + w_ref[ki * KSIZE + kj] * avg_c[kj]
            a1 = a1 + w_ref[KSIZE * KSIZE + ki * KSIZE + kj] * mx_c[kj]
        v = a0 + a1
        rs = (ki - PAD) * W
        rm = mask_ref[KSIZE + ki:KSIZE + ki + 1, :]       # (1, HWp)
        if rs != 0:
            v = pltpu.roll(v, (-rs) % n, axis=lane_axis)  # out[b] = in[b + rs]
        term = v * rm
        conv = term if conv is None else conv + term
    return jax.nn.sigmoid(conv)


def _spatial_attention_kernel(w_ref, mask_ref, x_ref, o_ref, *, W):
    # Single-pass kernel: whole (TB, C, HWp) block per grid step.
    x = x_ref[...]                                            # (TB, C, HWp)
    C = x.shape[1]
    # Channel pooling straight off the block (no full f32 copy of x).
    avg = jnp.sum(x, axis=1, dtype=jnp.float32) * (1.0 / C)   # (TB, HWp)
    mx = jnp.max(x, axis=1).astype(jnp.float32)               # (TB, HWp)
    attn = _conv_sigmoid(avg, mx, w_ref, mask_ref, W)         # (TB, HWp) f32
    # Final multiply in the input dtype (attn cast down once).
    o_ref[...] = (x * attn[:, None, :].astype(x.dtype)).astype(o_ref.dtype)


def _attn_pass_kernel(w_ref, mask_ref, x_ref, attn_ref, sum_sc, max_sc, *, W, C):
    # Fallback pass 1: running channel sum/max over C-tiles -> attention map.
    c = pl.program_id(1)

    @pl.when(c == 0)
    def _():
        sum_sc[...] = jnp.zeros(sum_sc.shape, jnp.float32)
        max_sc[...] = jnp.full(max_sc.shape, -jnp.inf, jnp.float32)

    x = x_ref[...]                                            # (1, tc, HWp)
    sum_sc[...] += jnp.sum(x, axis=1, dtype=jnp.float32)
    max_sc[...] = jnp.maximum(max_sc[...], jnp.max(x, axis=1).astype(jnp.float32))

    @pl.when(c == pl.num_programs(1) - 1)
    def _():
        avg = sum_sc[...] * (1.0 / C)                         # (1, HWp)
        attn = _conv_sigmoid(avg, max_sc[...], w_ref, mask_ref, W)
        attn_ref[...] = attn[:, None, :]                      # (1, 1, HWp)


def _apply_attn_kernel(attn_ref, x_ref, o_ref):
    # Fallback pass 2: broadcast multiply over C-tiles.
    x = x_ref[...]                                            # (1, tc, HWp)
    attn = attn_ref[...].astype(x.dtype)                      # (1, 1, HWp)
    o_ref[...] = (x * attn).astype(o_ref.dtype)


def spatial_attention(x, conv_weight):
    """x: (N, C, H, W); conv_weight: (1, 2, 7, 7).  Returns (N, C, H, W)."""
    N, C, H, W = x.shape
    HW = H * W
    HWp = max(128, ((HW + 127) // 128) * 128)     # lane-dense spatial padding

    x_flat = x.reshape(N, C, HW)
    if HWp != HW:
        x_flat = jnp.pad(x_flat, ((0, 0), (0, 0), (0, HWp - HW)))
    # Weight flattening order matches concat([avg, mx]): in-ch 0 = avg, 1 = max.
    w_flat = conv_weight.reshape(-1).astype(jnp.float32)      # (98,)

    # Precomputed 0/1 validity masks for the 7 horizontal and 7 vertical tap
    # offsets of the flattened lane rotations.  Pad lanes are masked off.
    idx = jnp.arange(HWp, dtype=jnp.int32)
    col, row, in_map = idx % W, idx // W, idx < HW
    col_masks = [(in_map & (col + (k - PAD) >= 0) & (col + (k - PAD) < W))
                 .astype(jnp.float32) for k in range(KSIZE)]
    row_masks = [(in_map & (row + (k - PAD) >= 0) & (row + (k - PAD) < H))
                 .astype(jnp.float32) for k in range(KSIZE)]
    masks = jnp.stack(col_masks + row_masks, axis=0)          # (14, HWp)

    itemsize = x.dtype.itemsize
    bytes_per_n = C * HWp * itemsize                # one batch element (in OR out)
    tmp_per_n = 24 * HWp * 4 + C * HWp * 4          # f32 conv temporaries + product
    mask_bytes = 2 * KSIZE * HWp * 4

    # Per-generation VMEM budget (128 MiB on v5e/v6e, 64 MiB on v7x).
    try:
        vmem_capacity = int(pltpu.get_tpu_info().vmem_capacity_bytes)
    except Exception:  # conservative fallback if the query is unavailable
        vmem_capacity = 64 << 20
    if vmem_capacity >= (96 << 20):                 # v5e / v6e (128 MiB parts)
        io_budget, vmem_cap = 44 << 20, 100 << 20
    else:                                           # v7x (64 MiB parts)
        io_budget = vmem_capacity // 3
        vmem_cap = max(32 << 20, min(56 << 20, vmem_capacity - (8 << 20)))

    def _limit(needed):
        return int(min(vmem_cap, max(16 << 20, needed + (4 << 20))))

    single_pass_fits = (4 * bytes_per_n + tmp_per_n + 2 * mask_bytes
                        <= vmem_cap - (2 << 20))

    if single_pass_fits:
        # Batch tile: largest divisor of N that fits the I/O budget while
        # keeping >= min(N, 4) grid steps (2 TCs on v7x + pipeline overlap).
        tb_cap = max(1, N // min(N, 4))

        def fits(t):
            return (4 * t * bytes_per_n <= io_budget and
                    4 * t * bytes_per_n + t * tmp_per_n + 2 * mask_bytes
                    <= vmem_cap - (2 << 20))

        tb = 1
        for d in range(1, tb_cap + 1):
            if N % d == 0 and fits(d):
                tb = d

        out_flat = pl.pallas_call(
            functools.partial(_spatial_attention_kernel, W=W),
            out_shape=jax.ShapeDtypeStruct((N, C, HWp), x.dtype),
            grid_spec=pltpu.PrefetchScalarGridSpec(
                num_scalar_prefetch=0,
                grid=(N // tb,),
                in_specs=[
                    pl.BlockSpec(memory_space=pltpu.MemorySpace.SMEM),  # weights
                    pl.BlockSpec((2 * KSIZE, HWp), lambda b: (0, 0)),   # masks
                    pl.BlockSpec((tb, C, HWp), lambda b: (b, 0, 0)),    # x block
                ],
                out_specs=pl.BlockSpec((tb, C, HWp), lambda b: (b, 0, 0)),
            ),
            compiler_params=pltpu.CompilerParams(
                dimension_semantics=("parallel",),
                vmem_limit_bytes=_limit(4 * tb * bytes_per_n + tb * tmp_per_n
                                        + 2 * mask_bytes)),
        )(w_flat, masks, x_flat)
    else:
        # ---- C-tiled two-pass fallback (large C*H*W, e.g. v7x 64 MiB) ------
        # ~1.5x HBM traffic (2 reads + 1 write), so only used when the whole
        # (C, HWp) slab no longer fits VMEM.
        divisors = [d for d in range(1, C + 1)
                    if C % d == 0 and (d % 8 == 0 or d == C)]

        def c_fits(t):
            return (4 * t * HWp * itemsize + 30 * HWp * 4 + 2 * mask_bytes
                    <= vmem_cap - (2 << 20))

        fitting = [d for d in divisors if c_fits(d)]
        tc = max(fitting) if fitting else min(divisors)

        attn = pl.pallas_call(
            functools.partial(_attn_pass_kernel, W=W, C=C),
            out_shape=jax.ShapeDtypeStruct((N, 1, HWp), jnp.float32),
            grid_spec=pltpu.PrefetchScalarGridSpec(
                num_scalar_prefetch=0,
                grid=(N, C // tc),
                in_specs=[
                    pl.BlockSpec(memory_space=pltpu.MemorySpace.SMEM),
                    pl.BlockSpec((2 * KSIZE, HWp), lambda n, c: (0, 0)),
                    pl.BlockSpec((1, tc, HWp), lambda n, c: (n, c, 0)),
                ],
                out_specs=pl.BlockSpec((1, 1, HWp), lambda n, c: (n, 0, 0)),
                scratch_shapes=[pltpu.VMEM((1, HWp), jnp.float32),
                                pltpu.VMEM((1, HWp), jnp.float32)],
            ),
            compiler_params=pltpu.CompilerParams(
                dimension_semantics=("parallel", "arbitrary"),
                vmem_limit_bytes=_limit(4 * tc * HWp * itemsize + 30 * HWp * 4
                                        + 2 * mask_bytes)),
        )(w_flat, masks, x_flat)

        out_flat = pl.pallas_call(
            _apply_attn_kernel,
            out_shape=jax.ShapeDtypeStruct((N, C, HWp), x.dtype),
            grid_spec=pltpu.PrefetchScalarGridSpec(
                num_scalar_prefetch=0,
                grid=(N, C // tc),
                in_specs=[
                    pl.BlockSpec((1, 1, HWp), lambda n, c: (n, 0, 0)),
                    pl.BlockSpec((1, tc, HWp), lambda n, c: (n, c, 0)),
                ],
                out_specs=pl.BlockSpec((1, tc, HWp), lambda n, c: (n, c, 0)),
            ),
            compiler_params=pltpu.CompilerParams(
                dimension_semantics=("parallel", "parallel"),
                vmem_limit_bytes=_limit(9 * tc * HWp * itemsize + 4 * HWp * 4)),
        )(attn, x_flat)

    out = out_flat if HWp == HW else out_flat[..., :HW]
    return out.reshape(N, C, H, W)


def _reference(x, conv_weight):
    """Pure-JAX reference mirroring the PyTorch forward."""
    avg = jnp.mean(x, axis=1, keepdims=True)
    mx = jnp.max(x, axis=1, keepdims=True)
    pool = jnp.concatenate([avg, mx], axis=1)                 # (N, 2, H, W)
    conv = jax.lax.conv_general_dilated(
        pool, conv_weight, window_strides=(1, 1),
        padding=((PAD, PAD), (PAD, PAD)),
        dimension_numbers=("NCHW", "OIHW", "NCHW"))
    attn = jax.nn.sigmoid(conv)                               # (N, 1, H, W)
    return x * attn


if __name__ == "__main__":
    key = jax.random.PRNGKey(0)
    kx, kw = jax.random.split(key)

    N, C, H, W = 2, 4, 16, 16
    x = jax.random.normal(kx, (N, C, H, W), dtype=jnp.float32)
    # Deterministic synthetic conv1 weight: Conv2d(2, 1, 7, bias=False) -> (1, 2, 7, 7)
    conv_weight = 0.1 * jax.random.normal(kw, (1, 2, KSIZE, KSIZE), dtype=jnp.float32)

    out = spatial_attention(x, conv_weight)
    out = jax.block_until_ready(out)

    ref = _reference(x, conv_weight)
    assert out.shape == (N, C, H, W)
    assert jnp.allclose(out, ref, atol=1e-5, rtol=1e-5), "mismatch vs reference"

    print("KERNEL_OK")
</pallas_src>

<mosaic_0001>
module attributes {stable_mosaic.version = 11 : i64} {
  func.func @_spatial_attention_kernel(%arg0: i32, %arg1: memref<98xf32, #tpu.memory_space<smem>>, %arg2: memref<14x256xf32, #tpu.memory_space<vmem>>, %arg3: memref<1x4x256xf32, #tpu.memory_space<vmem>>, %arg4: memref<1x4x256xf32, #tpu.memory_space<vmem>>) attributes {dimension_semantics = [#tpu.dimension_semantics<parallel>], iteration_bounds = array<i64: 2>, scalar_prefetch = 0 : i64, scratch_operands = 0 : i64, tpu.core_type = #tpu.core_type<tc>, window_params = [{transform_indices = @transform_0, window_bounds = array<i64: 98>}, {pipeline_mode = #tpu.pipeline_mode<synchronous>, transform_indices = @transform_1, window_bounds = array<i64: 14, 256>}, {transform_indices = @transform_2, window_bounds = array<i64: 1, 4, 256>}, {transform_indices = @transform_3, window_bounds = array<i64: 1, 4, 256>}]} {
    %c0 = arith.constant 0 : index
    %c0_0 = arith.constant 0 : index
    %c0_1 = arith.constant 0 : index
    %0 = vector.load %arg3[%c0, %c0_0, %c0_1] : memref<1x4x256xf32, #tpu.memory_space<vmem>>, vector<1x4x256xf32>
    %cst = arith.constant dense<0.000000e+00> : vector<1x256xf32>
    %1 = vector.multi_reduction <add>, %0, %cst [1] : vector<1x4x256xf32> to vector<1x256xf32>
    %cst_2 = arith.constant 2.500000e-01 : f32
    %2 = vector.broadcast %cst_2 : f32 to vector<1x256xf32>
    %3 = arith.mulf %1, %2 : vector<1x256xf32>
    %cst_3 = arith.constant dense<0xFF800000> : vector<1x256xf32>
    %4 = vector.multi_reduction <maximumf>, %0, %cst_3 [1] : vector<1x4x256xf32> to vector<1x256xf32>
    %c0_4 = arith.constant 0 : index
    %c0_5 = arith.constant 0 : index
    %5 = vector.load %arg2[%c0_4, %c0_5] : memref<14x256xf32, #tpu.memory_space<vmem>>, vector<1x256xf32>
    %c3_i32 = arith.constant 3 : i32
    %6 = tpu.dynamic_rotate %3 by %c3_i32 dim 1 : vector<1x256xf32>, i32 -> vector<1x256xf32>
    %c3_i32_6 = arith.constant 3 : i32
    %7 = tpu.dynamic_rotate %4 by %c3_i32_6 dim 1 : vector<1x256xf32>, i32 -> vector<1x256xf32>
    %8 = arith.mulf %6, %5 : vector<1x256xf32>
    %9 = arith.mulf %7, %5 : vector<1x256xf32>
    %c1 = arith.constant 1 : index
    %c0_7 = arith.constant 0 : index
    %10 = vector.load %arg2[%c1, %c0_7] : memref<14x256xf32, #tpu.memory_space<vmem>>, vector<1x256xf32>
    %c2_i32 = arith.constant 2 : i32
    %11 = tpu.dynamic_rotate %3 by %c2_i32 dim 1 : vector<1x256xf32>, i32 -> vector<1x256xf32>
    %c2_i32_8 = arith.constant 2 : i32
    %12 = tpu.dynamic_rotate %4 by %c2_i32_8 dim 1 : vector<1x256xf32>, i32 -> vector<1x256xf32>
    %13 = arith.mulf %11, %10 : vector<1x256xf32>
    %14 = arith.mulf %12, %10 : vector<1x256xf32>
    %c2 = arith.constant 2 : index
    %c0_9 = arith.constant 0 : index
    %15 = vector.load %arg2[%c2, %c0_9] : memref<14x256xf32, #tpu.memory_space<vmem>>, vector<1x256xf32>
    %c1_i32 = arith.constant 1 : i32
    %16 = tpu.dynamic_rotate %3 by %c1_i32 dim 1 : vector<1x256xf32>, i32 -> vector<1x256xf32>
    %c1_i32_10 = arith.constant 1 : i32
    %17 = tpu.dynamic_rotate %4 by %c1_i32_10 dim 1 : vector<1x256xf32>, i32 -> vector<1x256xf32>
    %18 = arith.mulf %16, %15 : vector<1x256xf32>
    %19 = arith.mulf %17, %15 : vector<1x256xf32>
    %c3 = arith.constant 3 : index
    %c0_11 = arith.constant 0 : index
    %20 = vector.load %arg2[%c3, %c0_11] : memref<14x256xf32, #tpu.memory_space<vmem>>, vector<1x256xf32>
    %21 = arith.mulf %3, %20 : vector<1x256xf32>
    %22 = arith.mulf %4, %20 : vector<1x256xf32>
    %c4 = arith.constant 4 : index
    %c0_12 = arith.constant 0 : index
    %23 = vector.load %arg2[%c4, %c0_12] : memref<14x256xf32, #tpu.memory_space<vmem>>, vector<1x256xf32>
    %c255_i32 = arith.constant 255 : i32
    %24 = tpu.dynamic_rotate %3 by %c255_i32 dim 1 : vector<1x256xf32>, i32 -> vector<1x256xf32>
    %c255_i32_13 = arith.constant 255 : i32
    %25 = tpu.dynamic_rotate %4 by %c255_i32_13 dim 1 : vector<1x256xf32>, i32 -> vector<1x256xf32>
    %26 = arith.mulf %24, %23 : vector<1x256xf32>
    %27 = arith.mulf %25, %23 : vector<1x256xf32>
    %c5 = arith.constant 5 : index
    %c0_14 = arith.constant 0 : index
    %28 = vector.load %arg2[%c5, %c0_14] : memref<14x256xf32, #tpu.memory_space<vmem>>, vector<1x256xf32>
    %c254_i32 = arith.constant 254 : i32
    %29 = tpu.dynamic_rotate %3 by %c254_i32 dim 1 : vector<1x256xf32>, i32 -> vector<1x256xf32>
    %c254_i32_15 = arith.constant 254 : i32
    %30 = tpu.dynamic_rotate %4 by %c254_i32_15 dim 1 : vector<1x256xf32>, i32 -> vector<1x256xf32>
    %31 = arith.mulf %29, %28 : vector<1x256xf32>
    %32 = arith.mulf %30, %28 : vector<1x256xf32>
    %c6 = arith.constant 6 : index
    %c0_16 = arith.constant 0 : index
    %33 = vector.load %arg2[%c6, %c0_16] : memref<14x256xf32, #tpu.memory_space<vmem>>, vector<1x256xf32>
    %c253_i32 = arith.constant 253 : i32
    %34 = tpu.dynamic_rotate %3 by %c253_i32 dim 1 : vector<1x256xf32>, i32 -> vector<1x256xf32>
    %c253_i32_17 = arith.constant 253 : i32
    %35 = tpu.dynamic_rotate %4 by %c253_i32_17 dim 1 : vector<1x256xf32>, i32 -> vector<1x256xf32>
    %36 = arith.mulf %34, %33 : vector<1x256xf32>
    %37 = arith.mulf %35, %33 : vector<1x256xf32>
    %c0_18 = arith.constant 0 : index
    %38 = memref.load %arg1[%c0_18] : memref<98xf32, #tpu.memory_space<smem>>
    %39 = vector.broadcast %38 : f32 to vector<1x256xf32>
    %40 = arith.mulf %39, %8 : vector<1x256xf32>
    %c49 = arith.constant 49 : index
    %41 = memref.load %arg1[%c49] : memref<98xf32, #tpu.memory_space<smem>>
    %42 = vector.broadcast %41 : f32 to vector<1x256xf32>
    %43 = arith.mulf %42, %9 : vector<1x256xf32>
    %c1_19 = arith.constant 1 : index
    %44 = memref.load %arg1[%c1_19] : memref<98xf32, #tpu.memory_space<smem>>
    %45 = vector.broadcast %44 : f32 to vector<1x256xf32>
    %46 = arith.mulf %45, %13 : vector<1x256xf32>
    %47 = arith.addf %40, %46 : vector<1x256xf32>
    %c50 = arith.constant 50 : index
    %48 = memref.load %arg1[%c50] : memref<98xf32, #tpu.memory_space<smem>>
    %49 = vector.broadcast %48 : f32 to vector<1x256xf32>
    %50 = arith.mulf %49, %14 : vector<1x256xf32>
    %51 = arith.addf %43, %50 : vector<1x256xf32>
    %c2_20 = arith.constant 2 : index
    %52 = memref.load %arg1[%c2_20] : memref<98xf32, #tpu.memory_space<smem>>
    %53 = vector.broadcast %52 : f32 to vector<1x256xf32>
    %54 = arith.mulf %53, %18 : vector<1x256xf32>
    %55 = arith.addf %47, %54 : vector<1x256xf32>
    %c51 = arith.constant 51 : index
    %56 = memref.load %arg1[%c51] : memref<98xf32, #tpu.memory_space<smem>>
    %57 = vector.broadcast %56 : f32 to vector<1x256xf32>
    %58 = arith.mulf %57, %19 : vector<1x256xf32>
    %59 = arith.addf %51, %58 : vector<1x256xf32>
    %c3_21 = arith.constant 3 : index
    %60 = memref.load %arg1[%c3_21] : memref<98xf32, #tpu.memory_space<smem>>
    %61 = vector.broadcast %60 : f32 to vector<1x256xf32>
    %62 = arith.mulf %61, %21 : vector<1x256xf32>
    %63 = arith.addf %55, %62 : vector<1x256xf32>
    %c52 = arith.constant 52 : index
    %64 = memref.load %arg1[%c52] : memref<98xf32, #tpu.memory_space<smem>>
    %65 = vector.broadcast %64 : f32 to vector<1x256xf32>
    %66 = arith.mulf %65, %22 : vector<1x256xf32>
    %67 = arith.addf %59, %66 : vector<1x256xf32>
    %c4_22 = arith.constant 4 : index
    %68 = memref.load %arg1[%c4_22] : memref<98xf32, #tpu.memory_space<smem>>
    %69 = vector.broadcast %68 : f32 to vector<1x256xf32>
    %70 = arith.mulf %69, %26 : vector<1x256xf32>
    %71 = arith.addf %63, %70 : vector<1x256xf32>
    %c53 = arith.constant 53 : index
    %72 = memref.load %arg1[%c53] : memref<98xf32, #tpu.memory_space<smem>>
    %73 = vector.broadcast %72 : f32 to vector<1x256xf32>
    %74 = arith.mulf %73, %27 : vector<1x256xf32>
    %75 = arith.addf %67, %74 : vector<1x256xf32>
    %c5_23 = arith.constant 5 : index
    %76 = memref.load %arg1[%c5_23] : memref<98xf32, #tpu.memory_space<smem>>
    %77 = vector.broadcast %76 : f32 to vector<1x256xf32>
    %78 = arith.mulf %77, %31 : vector<1x256xf32>
    %79 = arith.addf %71, %78 : vector<1x256xf32>
    %c54 = arith.constant 54 : index
    %80 = memref.load %arg1[%c54] : memref<98xf32, #tpu.memory_space<smem>>
    %81 = vector.broadcast %80 : f32 to vector<1x256xf32>
    %82 = arith.mulf %81, %32 : vector<1x256xf32>
    %83 = arith.addf %75, %82 : vector<1x256xf32>
    %c6_24 = arith.constant 6 : index
    %84 = memref.load %arg1[%c6_24] : memref<98xf32, #tpu.memory_space<smem>>
    %85 = vector.broadcast %84 : f32 to vector<1x256xf32>
    %86 = arith.mulf %85, %36 : vector<1x256xf32>
    %87 = arith.addf %79, %86 : vector<1x256xf32>
    %c55 = arith.constant 55 : index
    %88 = memref.load %arg1[%c55] : memref<98xf32, #tpu.memory_space<smem>>
    %89 = vector.broadcast %88 : f32 to vector<1x256xf32>
    %90 = arith.mulf %89, %37 : vector<1x256xf32>
    %91 = arith.addf %83, %90 : vector<1x256xf32>
    %92 = arith.addf %87, %91 : vector<1x256xf32>
    %c7 = arith.constant 7 : index
    %c0_25 = arith.constant 0 : index
    %93 = vector.load %arg2[%c7, %c0_25] : memref<14x256xf32, #tpu.memory_space<vmem>>, vector<1x256xf32>
    %c48_i32 = arith.constant 48 : i32
    %94 = tpu.dynamic_rotate %92 by %c48_i32 dim 1 : vector<1x256xf32>, i32 -> vector<1x256xf32>
    %95 = arith.mulf %94, %93 : vector<1x256xf32>
    %c7_26 = arith.constant 7 : index
    %96 = memref.load %arg1[%c7_26] : memref<98xf32, #tpu.memory_space<smem>>
    %97 = vector.broadcast %96 : f32 to vector<1x256xf32>
    %98 = arith.mulf %97, %8 : vector<1x256xf32>
    %c56 = arith.constant 56 : index
    %99 = memref.load %arg1[%c56] : memref<98xf32, #tpu.memory_space<smem>>
    %100 = vector.broadcast %99 : f32 to vector<1x256xf32>
    %101 = arith.mulf %100, %9 : vector<1x256xf32>
    %c8 = arith.constant 8 : index
    %102 = memref.load %arg1[%c8] : memref<98xf32, #tpu.memory_space<smem>>
    %103 = vector.broadcast %102 : f32 to vector<1x256xf32>
    %104 = arith.mulf %103, %13 : vector<1x256xf32>
    %105 = arith.addf %98, %104 : vector<1x256xf32>
    %c57 = arith.constant 57 : index
    %106 = memref.load %arg1[%c57] : memref<98xf32, #tpu.memory_space<smem>>
    %107 = vector.broadcast %106 : f32 to vector<1x256xf32>
    %108 = arith.mulf %107, %14 : vector<1x256xf32>
    %109 = arith.addf %101, %108 : vector<1x256xf32>
    %c9 = arith.constant 9 : index
    %110 = memref.load %arg1[%c9] : memref<98xf32, #tpu.memory_space<smem>>
    %111 = vector.broadcast %110 : f32 to vector<1x256xf32>
    %112 = arith.mulf %111, %18 : vector<1x256xf32>
    %113 = arith.addf %105, %112 : vector<1x256xf32>
    %c58 = arith.constant 58 : index
    %114 = memref.load %arg1[%c58] : memref<98xf32, #tpu.memory_space<smem>>
    %115 = vector.broadcast %114 : f32 to vector<1x256xf32>
    %116 = arith.mulf %115, %19 : vector<1x256xf32>
    %117 = arith.addf %109, %116 : vector<1x256xf32>
    %c10 = arith.constant 10 : index
    %118 = memref.load %arg1[%c10] : memref<98xf32, #tpu.memory_space<smem>>
    %119 = vector.broadcast %118 : f32 to vector<1x256xf32>
    %120 = arith.mulf %119, %21 : vector<1x256xf32>
    %121 = arith.addf %113, %120 : vector<1x256xf32>
    %c59 = arith.constant 59 : index
    %122 = memref.load %arg1[%c59] : memref<98xf32, #tpu.memory_space<smem>>
    %123 = vector.broadcast %122 : f32 to vector<1x256xf32>
    %124 = arith.mulf %123, %22 : vector<1x256xf32>
    %125 = arith.addf %117, %124 : vector<1x256xf32>
    %c11 = arith.constant 11 : index
    %126 = memref.load %arg1[%c11] : memref<98xf32, #tpu.memory_space<smem>>
    %127 = vector.broadcast %126 : f32 to vector<1x256xf32>
    %128 = arith.mulf %127, %26 : vector<1x256xf32>
    %129 = arith.addf %121, %128 : vector<1x256xf32>
    %c60 = arith.constant 60 : index
    %130 = memref.load %arg1[%c60] : memref<98xf32, #tpu.memory_space<smem>>
    %131 = vector.broadcast %130 : f32 to vector<1x256xf32>
    %132 = arith.mulf %131, %27 : vector<1x256xf32>
    %133 = arith.addf %125, %132 : vector<1x256xf32>
    %c12 = arith.constant 12 : index
    %134 = memref.load %arg1[%c12] : memref<98xf32, #tpu.memory_space<smem>>
    %135 = vector.broadcast %134 : f32 to vector<1x256xf32>
    %136 = arith.mulf %135, %31 : vector<1x256xf32>
    %137 = arith.addf %129, %136 : vector<1x256xf32>
    %c61 = arith.constant 61 : index
    %138 = memref.load %arg1[%c61] : memref<98xf32, #tpu.memory_space<smem>>
    %139 = vector.broadcast %138 : f32 to vector<1x256xf32>
    %140 = arith.mulf %139, %32 : vector<1x256xf32>
    %141 = arith.addf %133, %140 : vector<1x256xf32>
    %c13 = arith.constant 13 : index
    %142 = memref.load %arg1[%c13] : memref<98xf32, #tpu.memory_space<smem>>
    %143 = vector.broadcast %142 : f32 to vector<1x256xf32>
    %144 = arith.mulf %143, %36 : vector<1x256xf32>
    %145 = arith.addf %137, %144 : vector<1x256xf32>
    %c62 = arith.constant 62 : index
    %146 = memref.load %arg1[%c62] : memref<98xf32, #tpu.memory_space<smem>>
    %147 = vector.broadcast %146 : f32 to vector<1x256xf32>
    %148 = arith.mulf %147, %37 : vector<1x256xf32>
    %149 = arith.addf %141, %148 : vector<1x256xf32>
    %150 = arith.addf %145, %149 : vector<1x256xf32>
    %c8_27 = arith.constant 8 : index
    %c0_28 = arith.constant 0 : index
    %151 = vector.load %arg2[%c8_27, %c0_28] : memref<14x256xf32, #tpu.memory_space<vmem>>, vector<1x256xf32>
    %c32_i32 = arith.constant 32 : i32
    %152 = tpu.dynamic_rotate %150 by %c32_i32 dim 1 : vector<1x256xf32>, i32 -> vector<1x256xf32>
    %153 = arith.mulf %152, %151 : vector<1x256xf32>
    %154 = arith.addf %95, %153 : vector<1x256xf32>
    %c14 = arith.constant 14 : index
    %155 = memref.load %arg1[%c14] : memref<98xf32, #tpu.memory_space<smem>>
    %156 = vector.broadcast %155 : f32 to vector<1x256xf32>
    %157 = arith.mulf %156, %8 : vector<1x256xf32>
    %c63 = arith.constant 63 : index
    %158 = memref.load %arg1[%c63] : memref<98xf32, #tpu.memory_space<smem>>
    %159 = vector.broadcast %158 : f32 to vector<1x256xf32>
    %160 = arith.mulf %159, %9 : vector<1x256xf32>
    %c15 = arith.constant 15 : index
    %161 = memref.load %arg1[%c15] : memref<98xf32, #tpu.memory_space<smem>>
    %162 = vector.broadcast %161 : f32 to vector<1x256xf32>
    %163 = arith.mulf %162, %13 : vector<1x256xf32>
    %164 = arith.addf %157, %163 : vector<1x256xf32>
    %c64 = arith.constant 64 : index
    %165 = memref.load %arg1[%c64] : memref<98xf32, #tpu.memory_space<smem>>
    %166 = vector.broadcast %165 : f32 to vector<1x256xf32>
    %167 = arith.mulf %166, %14 : vector<1x256xf32>
    %168 = arith.addf %160, %167 : vector<1x256xf32>
    %c16 = arith.constant 16 : index
    %169 = memref.load %arg1[%c16] : memref<98xf32, #tpu.memory_space<smem>>
    %170 = vector.broadcast %169 : f32 to vector<1x256xf32>
    %171 = arith.mulf %170, %18 : vector<1x256xf32>
    %172 = arith.addf %164, %171 : vector<1x256xf32>
    %c65 = arith.constant 65 : index
    %173 = memref.load %arg1[%c65] : memref<98xf32, #tpu.memory_space<smem>>
    %174 = vector.broadcast %173 : f32 to vector<1x256xf32>
    %175 = arith.mulf %174, %19 : vector<1x256xf32>
    %176 = arith.addf %168, %175 : vector<1x256xf32>
    %c17 = arith.constant 17 : index
    %177 = memref.load %arg1[%c17] : memref<98xf32, #tpu.memory_space<smem>>
    %178 = vector.broadcast %177 : f32 to vector<1x256xf32>
    %179 = arith.mulf %178, %21 : vector<1x256xf32>
    %180 = arith.addf %172, %179 : vector<1x256xf32>
    %c66 = arith.constant 66 : index
    %181 = memref.load %arg1[%c66] : memref<98xf32, #tpu.memory_space<smem>>
    %182 = vector.broadcast %181 : f32 to vector<1x256xf32>
    %183 = arith.mulf %182, %22 : vector<1x256xf32>
    %184 = arith.addf %176, %183 : vector<1x256xf32>
    %c18 = arith.constant 18 : index
    %185 = memref.load %arg1[%c18] : memref<98xf32, #tpu.memory_space<smem>>
    %186 = vector.broadcast %185 : f32 to vector<1x256xf32>
    %187 = arith.mulf %186, %26 : vector<1x256xf32>
    %188 = arith.addf %180, %187 : vector<1x256xf32>
    %c67 = arith.constant 67 : index
    %189 = memref.load %arg1[%c67] : memref<98xf32, #tpu.memory_space<smem>>
    %190 = vector.broadcast %189 : f32 to vector<1x256xf32>
    %191 = arith.mulf %190, %27 : vector<1x256xf32>
    %192 = arith.addf %184, %191 : vector<1x256xf32>
    %c19 = arith.constant 19 : index
    %193 = memref.load %arg1[%c19] : memref<98xf32, #tpu.memory_space<smem>>
    %194 = vector.broadcast %193 : f32 to vector<1x256xf32>
    %195 = arith.mulf %194, %31 : vector<1x256xf32>
    %196 = arith.addf %188, %195 : vector<1x256xf32>
    %c68 = arith.constant 68 : index
    %197 = memref.load %arg1[%c68] : memref<98xf32, #tpu.memory_space<smem>>
    %198 = vector.broadcast %197 : f32 to vector<1x256xf32>
    %199 = arith.mulf %198, %32 : vector<1x256xf32>
    %200 = arith.addf %192, %199 : vector<1x256xf32>
    %c20 = arith.constant 20 : index
    %201 = memref.load %arg1[%c20] : memref<98xf32, #tpu.memory_space<smem>>
    %202 = vector.broadcast %201 : f32 to vector<1x256xf32>
    %203 = arith.mulf %202, %36 : vector<1x256xf32>
    %204 = arith.addf %196, %203 : vector<1x256xf32>
    %c69 = arith.constant 69 : index
    %205 = memref.load %arg1[%c69] : memref<98xf32, #tpu.memory_space<smem>>
    %206 = vector.broadcast %205 : f32 to vector<1x256xf32>
    %207 = arith.mulf %206, %37 : vector<1x256xf32>
    %208 = arith.addf %200, %207 : vector<1x256xf32>
    %209 = arith.addf %204, %208 : vector<1x256xf32>
    %c9_29 = arith.constant 9 : index
    %c0_30 = arith.constant 0 : index
    %210 = vector.load %arg2[%c9_29, %c0_30] : memref<14x256xf32, #tpu.memory_space<vmem>>, vector<1x256xf32>
    %c16_i32 = arith.constant 16 : i32
    %211 = tpu.dynamic_rotate %209 by %c16_i32 dim 1 : vector<1x256xf32>, i32 -> vector<1x256xf32>
    %212 = arith.mulf %211, %210 : vector<1x256xf32>
    %213 = arith.addf %154, %212 : vector<1x256xf32>
    %c21 = arith.constant 21 : index
    %214 = memref.load %arg1[%c21] : memref<98xf32, #tpu.memory_space<smem>>
    %215 = vector.broadcast %214 : f32 to vector<1x256xf32>
    %216 = arith.mulf %215, %8 : vector<1x256xf32>
    %c70 = arith.constant 70 : index
    %217 = memref.load %arg1[%c70] : memref<98xf32, #tpu.memory_space<smem>>
    %218 = vector.broadcast %217 : f32 to vector<1x256xf32>
    %219 = arith.mulf %218, %9 : vector<1x256xf32>
    %c22 = arith.constant 22 : index
    %220 = memref.load %arg1[%c22] : memref<98xf32, #tpu.memory_space<smem>>
    %221 = vector.broadcast %220 : f32 to vector<1x256xf32>
    %222 = arith.mulf %221, %13 : vector<1x256xf32>
    %223 = arith.addf %216, %222 : vector<1x256xf32>
    %c71 = arith.constant 71 : index
    %224 = memref.load %arg1[%c71] : memref<98xf32, #tpu.memory_space<smem>>
    %225 = vector.broadcast %224 : f32 to vector<1x256xf32>
    %226 = arith.mulf %225, %14 : vector<1x256xf32>
    %227 = arith.addf %219, %226 : vector<1x256xf32>
    %c23 = arith.constant 23 : index
    %228 = memref.load %arg1[%c23] : memref<98xf32, #tpu.memory_space<smem>>
    %229 = vector.broadcast %228 : f32 to vector<1x256xf32>
    %230 = arith.mulf %229, %18 : vector<1x256xf32>
    %231 = arith.addf %223, %230 : vector<1x256xf32>
    %c72 = arith.constant 72 : index
    %232 = memref.load %arg1[%c72] : memref<98xf32, #tpu.memory_space<smem>>
    %233 = vector.broadcast %232 : f32 to vector<1x256xf32>
    %234 = arith.mulf %233, %19 : vector<1x256xf32>
    %235 = arith.addf %227, %234 : vector<1x256xf32>
    %c24 = arith.constant 24 : index
    %236 = memref.load %arg1[%c24] : memref<98xf32, #tpu.memory_space<smem>>
    %237 = vector.broadcast %236 : f32 to vector<1x256xf32>
    %238 = arith.mulf %237, %21 : vector<1x256xf32>
    %239 = arith.addf %231, %238 : vector<1x256xf32>
    %c73 = arith.constant 73 : index
    %240 = memref.load %arg1[%c73] : memref<98xf32, #tpu.memory_space<smem>>
    %241 = vector.broadcast %240 : f32 to vector<1x256xf32>
    %242 = arith.mulf %241, %22 : vector<1x256xf32>
    %243 = arith.addf %235, %242 : vector<1x256xf32>
    %c25 = arith.constant 25 : index
    %244 = memref.load %arg1[%c25] : memref<98xf32, #tpu.memory_space<smem>>
    %245 = vector.broadcast %244 : f32 to vector<1x256xf32>
    %246 = arith.mulf %245, %26 : vector<1x256xf32>
    %247 = arith.addf %239, %246 : vector<1x256xf32>
    %c74 = arith.constant 74 : index
    %248 = memref.load %arg1[%c74] : memref<98xf32, #tpu.memory_space<smem>>
    %249 = vector.broadcast %248 : f32 to vector<1x256xf32>
    %250 = arith.mulf %249, %27 : vector<1x256xf32>
    %251 = arith.addf %243, %250 : vector<1x256xf32>
    %c26 = arith.constant 26 : index
    %252 = memref.load %arg1[%c26] : memref<98xf32, #tpu.memory_space<smem>>
    %253 = vector.broadcast %252 : f32 to vector<1x256xf32>
    %254 = arith.mulf %253, %31 : vector<1x256xf32>
    %255 = arith.addf %247, %254 : vector<1x256xf32>
    %c75 = arith.constant 75 : index
    %256 = memref.load %arg1[%c75] : memref<98xf32, #tpu.memory_space<smem>>
    %257 = vector.broadcast %256 : f32 to vector<1x256xf32>
    %258 = arith.mulf %257, %32 : vector<1x256xf32>
    %259 = arith.addf %251, %258 : vector<1x256xf32>
    %c27 = arith.constant 27 : index
    %260 = memref.load %arg1[%c27] : memref<98xf32, #tpu.memory_space<smem>>
    %261 = vector.broadcast %260 : f32 to vector<1x256xf32>
    %262 = arith.mulf %261, %36 : vector<1x256xf32>
    %263 = arith.addf %255, %262 : vector<1x256xf32>
    %c76 = arith.constant 76 : index
    %264 = memref.load %arg1[%c76] : memref<98xf32, #tpu.memory_space<smem>>
    %265 = vector.broadcast %264 : f32 to vector<1x256xf32>
    %266 = arith.mulf %265, %37 : vector<1x256xf32>
    %267 = arith.addf %259, %266 : vector<1x256xf32>
    %268 = arith.addf %263, %267 : vector<1x256xf32>
    %c10_31 = arith.constant 10 : index
    %c0_32 = arith.constant 0 : index
    %269 = vector.load %arg2[%c10_31, %c0_32] : memref<14x256xf32, #tpu.memory_space<vmem>>, vector<1x256xf32>
    %270 = arith.mulf %268, %269 : vector<1x256xf32>
    %271 = arith.addf %213, %270 : vector<1x256xf32>
    %c28 = arith.constant 28 : index
    %272 = memref.load %arg1[%c28] : memref<98xf32, #tpu.memory_space<smem>>
    %273 = vector.broadcast %272 : f32 to vector<1x256xf32>
    %274 = arith.mulf %273, %8 : vector<1x256xf32>
    %c77 = arith.constant 77 : index
    %275 = memref.load %arg1[%c77] : memref<98xf32, #tpu.memory_space<smem>>
    %276 = vector.broadcast %275 : f32 to vector<1x256xf32>
    %277 = arith.mulf %276, %9 : vector<1x256xf32>
    %c29 = arith.constant 29 : index
    %278 = memref.load %arg1[%c29] : memref<98xf32, #tpu.memory_space<smem>>
    %279 = vector.broadcast %278 : f32 to vector<1x256xf32>
    %280 = arith.mulf %279, %13 : vector<1x256xf32>
    %281 = arith.addf %274, %280 : vector<1x256xf32>
    %c78 = arith.constant 78 : index
    %282 = memref.load %arg1[%c78] : memref<98xf32, #tpu.memory_space<smem>>
    %283 = vector.broadcast %282 : f32 to vector<1x256xf32>
    %284 = arith.mulf %283, %14 : vector<1x256xf32>
    %285 = arith.addf %277, %284 : vector<1x256xf32>
    %c30 = arith.constant 30 : index
    %286 = memref.load %arg1[%c30] : memref<98xf32, #tpu.memory_space<smem>>
    %287 = vector.broadcast %286 : f32 to vector<1x256xf32>
    %288 = arith.mulf %287, %18 : vector<1x256xf32>
    %289 = arith.addf %281, %288 : vector<1x256xf32>
    %c79 = arith.constant 79 : index
    %290 = memref.load %arg1[%c79] : memref<98xf32, #tpu.memory_space<smem>>
    %291 = vector.broadcast %290 : f32 to vector<1x256xf32>
    %292 = arith.mulf %291, %19 : vector<1x256xf32>
    %293 = arith.addf %285, %292 : vector<1x256xf32>
    %c31 = arith.constant 31 : index
    %294 = memref.load %arg1[%c31] : memref<98xf32, #tpu.memory_space<smem>>
    %295 = vector.broadcast %294 : f32 to vector<1x256xf32>
    %296 = arith.mulf %295, %21 : vector<1x256xf32>
    %297 = arith.addf %289, %296 : vector<1x256xf32>
    %c80 = arith.constant 80 : index
    %298 = memref.load %arg1[%c80] : memref<98xf32, #tpu.memory_space<smem>>
    %299 = vector.broadcast %298 : f32 to vector<1x256xf32>
    %300 = arith.mulf %299, %22 : vector<1x256xf32>
    %301 = arith.addf %293, %300 : vector<1x256xf32>
    %c32 = arith.constant 32 : index
    %302 = memref.load %arg1[%c32] : memref<98xf32, #tpu.memory_space<smem>>
    %303 = vector.broadcast %302 : f32 to vector<1x256xf32>
    %304 = arith.mulf %303, %26 : vector<1x256xf32>
    %305 = arith.addf %297, %304 : vector<1x256xf32>
    %c81 = arith.constant 81 : index
    %306 = memref.load %arg1[%c81] : memref<98xf32, #tpu.memory_space<smem>>
    %307 = vector.broadcast %306 : f32 to vector<1x256xf32>
    %308 = arith.mulf %307, %27 : vector<1x256xf32>
    %309 = arith.addf %301, %308 : vector<1x256xf32>
    %c33 = arith.constant 33 : index
    %310 = memref.load %arg1[%c33] : memref<98xf32, #tpu.memory_space<smem>>
    %311 = vector.broadcast %310 : f32 to vector<1x256xf32>
    %312 = arith.mulf %311, %31 : vector<1x256xf32>
    %313 = arith.addf %305, %312 : vector<1x256xf32>
    %c82 = arith.constant 82 : index
    %314 = memref.load %arg1[%c82] : memref<98xf32, #tpu.memory_space<smem>>
    %315 = vector.broadcast %314 : f32 to vector<1x256xf32>
    %316 = arith.mulf %315, %32 : vector<1x256xf32>
    %317 = arith.addf %309, %316 : vector<1x256xf32>
    %c34 = arith.constant 34 : index
    %318 = memref.load %arg1[%c34] : memref<98xf32, #tpu.memory_space<smem>>
    %319 = vector.broadcast %318 : f32 to vector<1x256xf32>
    %320 = arith.mulf %319, %36 : vector<1x256xf32>
    %321 = arith.addf %313, %320 : vector<1x256xf32>
    %c83 = arith.constant 83 : index
    %322 = memref.load %arg1[%c83] : memref<98xf32, #tpu.memory_space<smem>>
    %323 = vector.broadcast %322 : f32 to vector<1x256xf32>
    %324 = arith.mulf %323, %37 : vector<1x256xf32>
    %325 = arith.addf %317, %324 : vector<1x256xf32>
    %326 = arith.addf %321, %325 : vector<1x256xf32>
    %c11_33 = arith.constant 11 : index
    %c0_34 = arith.constant 0 : index
    %327 = vector.load %arg2[%c11_33, %c0_34] : memref<14x256xf32, #tpu.memory_space<vmem>>, vector<1x256xf32>
    %c240_i32 = arith.constant 240 : i32
    %328 = tpu.dynamic_rotate %326 by %c240_i32 dim 1 : vector<1x256xf32>, i32 -> vector<1x256xf32>
    %329 = arith.mulf %328, %327 : vector<1x256xf32>
    %330 = arith.addf %271, %329 : vector<1x256xf32>
    %c35 = arith.constant 35 : index
    %331 = memref.load %arg1[%c35] : memref<98xf32, #tpu.memory_space<smem>>
    %332 = vector.broadcast %331 : f32 to vector<1x256xf32>
    %333 = arith.mulf %332, %8 : vector<1x256xf32>
    %c84 = arith.constant 84 : index
    %334 = memref.load %arg1[%c84] : memref<98xf32, #tpu.memory_space<smem>>
    %335 = vector.broadcast %334 : f32 to vector<1x256xf32>
    %336 = arith.mulf %335, %9 : vector<1x256xf32>
    %c36 = arith.constant 36 : index
    %337 = memref.load %arg1[%c36] : memref<98xf32, #tpu.memory_space<smem>>
    %338 = vector.broadcast %337 : f32 to vector<1x256xf32>
    %339 = arith.mulf %338, %13 : vector<1x256xf32>
    %340 = arith.addf %333, %339 : vector<1x256xf32>
    %c85 = arith.constant 85 : index
    %341 = memref.load %arg1[%c85] : memref<98xf32, #tpu.memory_space<smem>>
    %342 = vector.broadcast %341 : f32 to vector<1x256xf32>
    %343 = arith.mulf %342, %14 : vector<1x256xf32>
    %344 = arith.addf %336, %343 : vector<1x256xf32>
    %c37 = arith.constant 37 : index
    %345 = memref.load %arg1[%c37] : memref<98xf32, #tpu.memory_space<smem>>
    %346 = vector.broadcast %345 : f32 to vector<1x256xf32>
    %347 = arith.mulf %346, %18 : vector<1x256xf32>
    %348 = arith.addf %340, %347 : vector<1x256xf32>
    %c86 = arith.constant 86 : index
    %349 = memref.load %arg1[%c86] : memref<98xf32, #tpu.memory_space<smem>>
    %350 = vector.broadcast %349 : f32 to vector<1x256xf32>
    %351 = arith.mulf %350, %19 : vector<1x256xf32>
    %352 = arith.addf %344, %351 : vector<1x256xf32>
    %c38 = arith.constant 38 : index
    %353 = memref.load %arg1[%c38] : memref<98xf32, #tpu.memory_space<smem>>
    %354 = vector.broadcast %353 : f32 to vector<1x256xf32>
    %355 = arith.mulf %354, %21 : vector<1x256xf32>
    %356 = arith.addf %348, %355 : vector<1x256xf32>
    %c87 = arith.constant 87 : index
    %357 = memref.load %arg1[%c87] : memref<98xf32, #tpu.memory_space<smem>>
    %358 = vector.broadcast %357 : f32 to vector<1x256xf32>
    %359 = arith.mulf %358, %22 : vector<1x256xf32>
    %360 = arith.addf %352, %359 : vector<1x256xf32>
    %c39 = arith.constant 39 : index
    %361 = memref.load %arg1[%c39] : memref<98xf32, #tpu.memory_space<smem>>
    %362 = vector.broadcast %361 : f32 to vector<1x256xf32>
    %363 = arith.mulf %362, %26 : vector<1x256xf32>
    %364 = arith.addf %356, %363 : vector<1x256xf32>
    %c88 = arith.constant 88 : index
    %365 = memref.load %arg1[%c88] : memref<98xf32, #tpu.memory_space<smem>>
    %366 = vector.broadcast %365 : f32 to vector<1x256xf32>
    %367 = arith.mulf %366, %27 : vector<1x256xf32>
    %368 = arith.addf %360, %367 : vector<1x256xf32>
    %c40 = arith.constant 40 : index
    %369 = memref.load %arg1[%c40] : memref<98xf32, #tpu.memory_space<smem>>
    %370 = vector.broadcast %369 : f32 to vector<1x256xf32>
    %371 = arith.mulf %370, %31 : vector<1x256xf32>
    %372 = arith.addf %364, %371 : vector<1x256xf32>
    %c89 = arith.constant 89 : index
    %373 = memref.load %arg1[%c89] : memref<98xf32, #tpu.memory_space<smem>>
    %374 = vector.broadcast %373 : f32 to vector<1x256xf32>
    %375 = arith.mulf %374, %32 : vector<1x256xf32>
    %376 = arith.addf %368, %375 : vector<1x256xf32>
    %c41 = arith.constant 41 : index
    %377 = memref.load %arg1[%c41] : memref<98xf32, #tpu.memory_space<smem>>
    %378 = vector.broadcast %377 : f32 to vector<1x256xf32>
    %379 = arith.mulf %378, %36 : vector<1x256xf32>
    %380 = arith.addf %372, %379 : vector<1x256xf32>
    %c90 = arith.constant 90 : index
    %381 = memref.load %arg1[%c90] : memref<98xf32, #tpu.memory_space<smem>>
    %382 = vector.broadcast %381 : f32 to vector<1x256xf32>
    %383 = arith.mulf %382, %37 : vector<1x256xf32>
    %384 = arith.addf %376, %383 : vector<1x256xf32>
    %385 = arith.addf %380, %384 : vector<1x256xf32>
    %c12_35 = arith.constant 12 : index
    %c0_36 = arith.constant 0 : index
    %386 = vector.load %arg2[%c12_35, %c0_36] : memref<14x256xf32, #tpu.memory_space<vmem>>, vector<1x256xf32>
    %c224_i32 = arith.constant 224 : i32
    %387 = tpu.dynamic_rotate %385 by %c224_i32 dim 1 : vector<1x256xf32>, i32 -> vector<1x256xf32>
    %388 = arith.mulf %387, %386 : vector<1x256xf32>
    %389 = arith.addf %330, %388 : vector<1x256xf32>
    %c42 = arith.constant 42 : index
    %390 = memref.load %arg1[%c42] : memref<98xf32, #tpu.memory_space<smem>>
    %391 = vector.broadcast %390 : f32 to vector<1x256xf32>
    %392 = arith.mulf %391, %8 : vector<1x256xf32>
    %c91 = arith.constant 91 : index
    %393 = memref.load %arg1[%c91] : memref<98xf32, #tpu.memory_space<smem>>
    %394 = vector.broadcast %393 : f32 to vector<1x256xf32>
    %395 = arith.mulf %394, %9 : vector<1x256xf32>
    %c43 = arith.constant 43 : index
    %396 = memref.load %arg1[%c43] : memref<98xf32, #tpu.memory_space<smem>>
    %397 = vector.broadcast %396 : f32 to vector<1x256xf32>
    %398 = arith.mulf %397, %13 : vector<1x256xf32>
    %399 = arith.addf %392, %398 : vector<1x256xf32>
    %c92 = arith.constant 92 : index
    %400 = memref.load %arg1[%c92] : memref<98xf32, #tpu.memory_space<smem>>
    %401 = vector.broadcast %400 : f32 to vector<1x256xf32>
    %402 = arith.mulf %401, %14 : vector<1x256xf32>
    %403 = arith.addf %395, %402 : vector<1x256xf32>
    %c44 = arith.constant 44 : index
    %404 = memref.load %arg1[%c44] : memref<98xf32, #tpu.memory_space<smem>>
    %405 = vector.broadcast %404 : f32 to vector<1x256xf32>
    %406 = arith.mulf %405, %18 : vector<1x256xf32>
    %407 = arith.addf %399, %406 : vector<1x256xf32>
    %c93 = arith.constant 93 : index
    %408 = memref.load %arg1[%c93] : memref<98xf32, #tpu.memory_space<smem>>
    %409 = vector.broadcast %408 : f32 to vector<1x256xf32>
    %410 = arith.mulf %409, %19 : vector<1x256xf32>
    %411 = arith.addf %403, %410 : vector<1x256xf32>
    %c45 = arith.constant 45 : index
    %412 = memref.load %arg1[%c45] : memref<98xf32, #tpu.memory_space<smem>>
    %413 = vector.broadcast %412 : f32 to vector<1x256xf32>
    %414 = arith.mulf %413, %21 : vector<1x256xf32>
    %415 = arith.addf %407, %414 : vector<1x256xf32>
    %c94 = arith.constant 94 : index
    %416 = memref.load %arg1[%c94] : memref<98xf32, #tpu.memory_space<smem>>
    %417 = vector.broadcast %416 : f32 to vector<1x256xf32>
    %418 = arith.mulf %417, %22 : vector<1x256xf32>
    %419 = arith.addf %411, %418 : vector<1x256xf32>
    %c46 = arith.constant 46 : index
    %420 = memref.load %arg1[%c46] : memref<98xf32, #tpu.memory_space<smem>>
    %421 = vector.broadcast %420 : f32 to vector<1x256xf32>
    %422 = arith.mulf %421, %26 : vector<1x256xf32>
    %423 = arith.addf %415, %422 : vector<1x256xf32>
    %c95 = arith.constant 95 : index
    %424 = memref.load %arg1[%c95] : memref<98xf32, #tpu.memory_space<smem>>
    %425 = vector.broadcast %424 : f32 to vector<1x256xf32>
    %426 = arith.mulf %425, %27 : vector<1x256xf32>
    %427 = arith.addf %419, %426 : vector<1x256xf32>
    %c47 = arith.constant 47 : index
    %428 = memref.load %arg1[%c47] : memref<98xf32, #tpu.memory_space<smem>>
    %429 = vector.broadcast %428 : f32 to vector<1x256xf32>
    %430 = arith.mulf %429, %31 : vector<1x256xf32>
    %431 = arith.addf %423, %430 : vector<1x256xf32>
    %c96 = arith.constant 96 : index
    %432 = memref.load %arg1[%c96] : memref<98xf32, #tpu.memory_space<smem>>
    %433 = vector.broadcast %432 : f32 to vector<1x256xf32>
    %434 = arith.mulf %433, %32 : vector<1x256xf32>
    %435 = arith.addf %427, %434 : vector<1x256xf32>
    %c48 = arith.constant 48 : index
    %436 = memref.load %arg1[%c48] : memref<98xf32, #tpu.memory_space<smem>>
    %437 = vector.broadcast %436 : f32 to vector<1x256xf32>
    %438 = arith.mulf %437, %36 : vector<1x256xf32>
    %439 = arith.addf %431, %438 : vector<1x256xf32>
    %c97 = arith.constant 97 : index
    %440 = memref.load %arg1[%c97] : memref<98xf32, #tpu.memory_space<smem>>
    %441 = vector.broadcast %440 : f32 to vector<1x256xf32>
    %442 = arith.mulf %441, %37 : vector<1x256xf32>
    %443 = arith.addf %435, %442 : vector<1x256xf32>
    %444 = arith.addf %439, %443 : vector<1x256xf32>
    %c13_37 = arith.constant 13 : index
    %c0_38 = arith.constant 0 : index
    %445 = vector.load %arg2[%c13_37, %c0_38] : memref<14x256xf32, #tpu.memory_space<vmem>>, vector<1x256xf32>
    %c208_i32 = arith.constant 208 : i32
    %446 = tpu.dynamic_rotate %444 by %c208_i32 dim 1 : vector<1x256xf32>, i32 -> vector<1x256xf32>
    %447 = arith.mulf %446, %445 : vector<1x256xf32>
    %448 = arith.addf %389, %447 : vector<1x256xf32>
    %449 = arith.negf %448 : vector<1x256xf32>
    %450 = math.exp %449 : vector<1x256xf32>
    %cst_39 = arith.constant 1.000000e+00 : f32
    %451 = vector.broadcast %cst_39 : f32 to vector<1x256xf32>
    %452 = arith.addf %451, %450 : vector<1x256xf32>
    %453 = arith.divf %451, %452 : vector<1x256xf32>
    %454 = vector.shape_cast %453 : vector<1x256xf32> to vector<1x1x256xf32>
    %455 = vector.broadcast %454 : vector<1x1x256xf32> to vector<1x4x256xf32>
    %456 = arith.mulf %0, %455 : vector<1x4x256xf32>
    %c0_40 = arith.constant 0 : index
    %c0_41 = arith.constant 0 : index
    %c0_42 = arith.constant 0 : index
    %457 = vector.load %arg4[%c0_40, %c0_41, %c0_42] : memref<1x4x256xf32, #tpu.memory_space<vmem>>, vector<1x4x256xf32>
    tpu.vector_store %arg4[%c0_40, %c0_41, %c0_42], %456 {strides = array<i32>} : memref<1x4x256xf32, #tpu.memory_space<vmem>>, vector<1x4x256xf32>,
    return
  }
  func.func @transform_0(%arg0: i32) -> i32 {
    %c0_i32 = arith.constant 0 : i32
    %c0_i32_0 = arith.constant 0 : i32
    return %c0_i32 : i32
  }
  func.func @transform_1(%arg0: i32) -> (i32, i32) {
    %c0_i32 = arith.constant 0 : i32
    %c0_i32_0 = arith.constant 0 : i32
    %c0_i32_1 = arith.constant 0 : i32
    return %c0_i32, %c0_i32_0 : i32, i32
  }
  func.func @transform_2(%arg0: i32) -> (i32, i32, i32) {
    %c0_i32 = arith.constant 0 : i32
    %c0_i32_0 = arith.constant 0 : i32
    %c0_i32_1 = arith.constant 0 : i32
    return %arg0, %c0_i32, %c0_i32_0 : i32, i32, i32
  }
  func.func @transform_3(%arg0: i32) -> (i32, i32, i32) {
    %c0_i32 = arith.constant 0 : i32
    %c0_i32_0 = arith.constant 0 : i32
    %c0_i32_1 = arith.constant 0 : i32
    return %arg0, %c0_i32, %c0_i32_0 : i32, i32, i32
  }
}

</mosaic_0001>

<llo_original>
// kernel: tpu_custom_call.1
$region0: #{tpu_custom_call.1}
  #allocation0 [shape = 'u32[]', space=smem, size = 0x4, offset = 0x4, fixed_abs, tag = 'smem constant byte address 0x4 - core index']
  #allocation1 [shape = 'u32[144,128]{1,0:T(1,128)}', space=vmem, size = 0x12000, scoped, tag = 'internal scratch']
  %s0 = inlined_call_operand.hbm [shape: f32[98], index: 0, kind: input, shape index: {}]
  %s1 = inlined_call_operand.hbm [shape: f32[14,256], index: 1, kind: input, shape index: {}]
  %s2 = inlined_call_operand.hbm [shape: f32[2,4,256], index: 2, kind: input, shape index: {}]
  %s3 = inlined_call_operand.hbm [shape: f32[2,4,256], index: 3, kind: output, shape index: {}]
  %s4 = sld [smem:[#allocation0]]
  $region57: #{tpu_custom_call.1} parent=0
    _
  %s6 = ssub.s32 1, %s4
  %s7 = scalar_select 0, %s6, %s4
  $region1: #{tpu_custom_call.1} parent=0
    #allocation2 [shape = 'u8[512]{0}', space=smem, size = 0x200, scoped, tag = 'input window, operand 0, single buffered']
    #allocation3 [shape = 's32[2]{0}', space=sflag, size = 0x8, scoped, tag = 'scoped memory for tpu_custom_call.1']
    #allocation4 [shape = 's32[2]{0}', space=sflag, size = 0x8, scoped, tag = 'scoped memory for tpu_custom_call.1']
    #allocation5 [shape = 's32[2]{0}', space=sflag, size = 0x8, scoped, tag = 'scoped memory for tpu_custom_call.1']
    #allocation6 [shape = 'u8[16384]{0}', space=vmem, size = 0x4000, scoped, tag = 'input window, operand 1, single buffered']
    #allocation7 [shape = 'u8[8192]{0}', space=vmem, size = 0x2000, scoped, tag = 'input window, operand 2']
    #allocation8 [shape = 's32[2]{0}', space=sflag, size = 0x8, scoped, tag = 'scoped memory for tpu_custom_call.1']
    #allocation9 [shape = 'u8[8192]{0}', space=vmem, size = 0x2000, scoped, tag = 'output window, operand 0']
    %8 = vsyncpa [#allocation5], 0
    %9 = vsyncpa [#allocation3], 0
    %10 = vsyncpa [#allocation8], 0
    %s11 = scalar_lea.sflag [#allocation8], 1
    %12 = vsyncpa %s11, 0
    %13 = vsyncpa [#allocation4], 0
    %s14 = scalar_lea.sflag [#allocation4], 1
    %15 = vsyncpa %s14, 0
    loop: start=0, step=1, limit=4
    $region2: #{tpu_custom_call.1} parent=1 // loop_pre_header
      _
    $region3: #{tpu_custom_call.1} parent=1 // loop_header
      %s17 = sphi 0, %s21
      %p18 = scmp.ge.s32.totalorder %s17, 4
      %s25 = sphi 0, %s25
      %s27 = sphi 0, %s25
      %s28 = sphi 0, %s27
      %s42 = sphi 0, %s28
      %s46 = sphi 0, %s46
      %s48 = sphi 0, %s46
      %s49 = sphi 0, %s48
      %s63 = sphi 0, %s49
      %s69 = sphi 0, %s71
      %s72 = sphi 0, %s69
      %s73 = sphi 0, %s72
      %s89 = sphi 0, %s73
      %s95 = sphi 0, %s97
      %s98 = sphi 0, %s95
      %s99 = sphi 0, %s98
      %s115 = sphi 0, %s99
    $region4: #{tpu_custom_call.1} parent=1 // loop_header_branch
      %20 = sbr.rel (%p18) target = $region8
    $region5: #{tpu_custom_call.1} parent=1 // loop_body
      %s22 = ssub.s32 %s17, 1
      %s23 = ssub.s32 %s17, 2
      %s24 = sadd.s32 %s17, 1
      %s26 = sadd.s32 %s25, 1
      %p29 = scmp.eq.s32.totalorder %s17, 1
      %p30 = scmp.ne.s32.totalorder %s25, %s27
      %p31 = scmp.eq.s32.totalorder %s17, 0
      %p32 = por %p30, %p31
      %p33 = scmp.ne.s32.totalorder %s25, %s27
      %p34 = scmp.eq.s32.totalorder %s22, 1
      %p35 = por %p33, %p34
      %p36 = scmp.ne.s32.totalorder %s27, %s28
      %p37 = scmp.eq.s32.totalorder %s22, 0
      %p38 = por %p36, %p37
      %p39 = scmp.ne.s32.totalorder %s27, %s28
      %p40 = scmp.eq.s32.totalorder %s23, 1
      %p41 = por %p39, %p40
      %p43 = scmp.ne.s32.totalorder %s28, %s42
      %p44 = scmp.eq.s32.totalorder %s23, 0
      %p45 = por %p43, %p44
      %s47 = sadd.s32 %s46, 1
      %p50 = scmp.eq.s32.totalorder %s17, 1
      %p51 = scmp.ne.s32.totalorder %s46, %s48
      %p52 = scmp.eq.s32.totalorder %s17, 0
      %p53 = por %p51, %p52
      %p54 = scmp.ne.s32.totalorder %s46, %s48
      %p55 = scmp.eq.s32.totalorder %s22, 1
      %p56 = por %p54, %p55
      %p57 = scmp.ne.s32.totalorder %s48, %s49
      %p58 = scmp.eq.s32.totalorder %s22, 0
      %p59 = por %p57, %p58
      %p60 = scmp.ne.s32.totalorder %s48, %s49
      %p61 = scmp.eq.s32.totalorder %s23, 1
      %p62 = por %p60, %p61
      %p64 = scmp.ne.s32.totalorder %s49, %s63
      %p65 = scmp.eq.s32.totalorder %s23, 0
      %p66 = por %p64, %p65
      %s67 = ssub.s32 %s17, %s24
      %p68 = scmp.eq.s32.totalorder %s67, 0
      %s70 = sadd.s32 %s69, 1
      %s71 = scalar_select %p68, %s69, %s70
      %p74 = pneg %p68
      %p75 = scmp.eq.s32.totalorder %s17, 1
      %p76 = por %p74, %p75
      %p77 = scmp.ne.s32.totalorder %s69, %s72
      %p78 = scmp.eq.s32.totalorder %s17, 0
      %p79 = por %p77, %p78
      %p80 = scmp.ne.s32.totalorder %s69, %s72
      %p81 = scmp.eq.s32.totalorder %s22, 1
      %p82 = por %p80, %p81
      %p83 = scmp.ne.s32.totalorder %s72, %s73
      %p84 = scmp.eq.s32.totalorder %s22, 0
      %p85 = por %p83, %p84
      %p86 = scmp.ne.s32.totalorder %s72, %s73
      %p87 = scmp.eq.s32.totalorder %s23, 1
      %p88 = por %p86, %p87
      %p90 = scmp.ne.s32.totalorder %s73, %s89
      %p91 = scmp.eq.s32.totalorder %s23, 0
      %p92 = por %p90, %p91
      %s93 = ssub.s32 %s17, %s24
      %p94 = scmp.eq.s32.totalorder %s93, 0
      %s96 = sadd.s32 %s95, 1
      %s97 = scalar_select %p94, %s95, %s96
      %p100 = pneg %p94
      %p101 = scmp.eq.s32.totalorder %s17, 1
      %p102 = por %p100, %p101
      %p103 = scmp.ne.s32.totalorder %s95, %s98
      %p104 = scmp.eq.s32.totalorder %s17, 0
      %p105 = por %p103, %p104
      %p106 = scmp.ne.s32.totalorder %s95, %s98
      %p107 = scmp.eq.s32.totalorder %s22, 1
      %p108 = por %p106, %p107
      %p109 = scmp.ne.s32.totalorder %s98, %s99
      %p110 = scmp.eq.s32.totalorder %s22, 0
      %p111 = por %p109, %p110
      %p112 = scmp.ne.s32.totalorder %s98, %s99
      %p113 = scmp.eq.s32.totalorder %s23, 1
      %p114 = por %p112, %p113
      %p116 = scmp.ne.s32.totalorder %s99, %s115
      %p117 = scmp.eq.s32.totalorder %s23, 0
      %p118 = por %p116, %p117
      %p119 = scmp.le.s32.totalorder 1, %s17
      %p120 = scmp.lt.s32.totalorder %s17, 3
      %p121 = pnand %p119, %p120
      %p122 = pneg %p121
      // Predicated region
      $region9: #{tpu_custom_call.1} parent=5 // pred_check
        _
      $region10: #{tpu_custom_call.1} parent=5 // pred_check_branch
        %124 = sbr.rel (%p121) target = $region12
      $region11: #{tpu_custom_call.1} parent=5 // pred_region
        %s125 = ssub.s32 %s17, 1
        // Predicated region
        $region13: #{tpu_custom_call.1} parent=11 // pred_check
          %p126 = pneg %p38
        $region14: #{tpu_custom_call.1} parent=11 // pred_check_branch
          %128 = sbr.rel (%p126) target = $region16
        $region15: #{tpu_custom_call.1} parent=11 // pred_region
          %s130 = ssub.s32 16, 16
          %131 = vsyncadd [#allocation5], %s130
          %134 = dma.hbm_to_smem %s0, 16, [#allocation2], [#allocation5]
        $region16: #{tpu_custom_call.1} parent=11 // pred_fallthru
          _
        // Predicated region
        $region17: #{tpu_custom_call.1} parent=11 // pred_check
          %p135 = pneg %p59
        $region18: #{tpu_custom_call.1} parent=11 // pred_check_branch
          %137 = sbr.rel (%p135) target = $region20
        $region19: #{tpu_custom_call.1} parent=11 // pred_region
          %s139 = ssub.s32 512, 512
          %140 = vsyncadd [#allocation3], %s139
          %s141 = sshll.u32 [#allocation6], 4
          %s142 = int_to_ptr.vmem [resolvable:$true] %s141
          %147 = dma.hbm_to_vmem [thread:$0]  %s1, 512, %s142, [#allocation3], 256, 256, 16
        $region20: #{tpu_custom_call.1} parent=11 // pred_fallthru
          _
      $region12: #{tpu_custom_call.1} parent=5 // pred_fallthru
        _
      %p148 = scmp.lt.s32.totalorder %s17, 2
      // Predicated region
      $region21: #{tpu_custom_call.1} parent=5 // pred_check
        %p149 = pneg %p148
      $region22: #{tpu_custom_call.1} parent=5 // pred_check_branch
        %151 = sbr.rel (%p149) target = $region24
      $region23: #{tpu_custom_call.1} parent=5 // pred_region
        // Predicated region
        $region25: #{tpu_custom_call.1} parent=23 // pred_check
          %p152 = pneg %p79
        $region26: #{tpu_custom_call.1} parent=23 // pred_check_branch
          %154 = sbr.rel (%p152) target = $region28
        $region27: #{tpu_custom_call.1} parent=23 // pred_region
          %s155 = sand.u32 %s69, 1
          %s156 = scalar_lea.sflag [#allocation8], %s155
          %s157 = sand.u32 %s69, 1
          %s158 = smul.addr %s157, 8
          %s159 = scalar_lea.vmem [#allocation7], %s158
          %s161 = ssub.s32 128, 128
          %162 = vsyncadd %s156, %s161
          %s163 = smul.addr %s17, 2
          %s164 = smul.addr %s163, 64
          %s165 = scalar_lea.hbm %s2, %s164
          %s167 = sshll.u32 %s159, 4
          %s168 = int_to_ptr.vmem [resolvable:$true] %s167
          %170 = dma.hbm_to_vmem [thread:$0]  %s165, 128, %s168, %s156
        $region28: #{tpu_custom_call.1} parent=23 // pred_fallthru
          _
      $region24: #{tpu_custom_call.1} parent=5 // pred_fallthru
        _
      %p171 = scmp.le.s32.totalorder 1, %s17
      %p172 = scmp.lt.s32.totalorder %s17, 3
      %p173 = pnand %p171, %p172
      %p174 = pneg %p173
      // Predicated region
      $region29: #{tpu_custom_call.1} parent=5 // pred_check
        _
      $region30: #{tpu_custom_call.1} parent=5 // pred_check_branch
        %176 = sbr.rel (%p173) target = $region32
      $region31: #{tpu_custom_call.1} parent=5 // pred_region
        %s177 = ssub.s32 %s17, 1
        // Predicated region
        $region33: #{tpu_custom_call.1} parent=31 // pred_check
          %p178 = pneg %p38
        $region34: #{tpu_custom_call.1} parent=31 // pred_check_branch
          %180 = sbr.rel (%p178) target = $region36
        $region35: #{tpu_custom_call.1} parent=31 // pred_region
          %181 = dma.done [#allocation5], 16
        $region36: #{tpu_custom_call.1} parent=31 // pred_fallthru
          _
        // Predicated region
        $region37: #{tpu_custom_call.1} parent=31 // pred_check
          %p182 = pneg %p59
        $region38: #{tpu_custom_call.1} parent=31 // pred_check_branch
          %184 = sbr.rel (%p182) target = $region40
        $region39: #{tpu_custom_call.1} parent=31 // pred_region
          %185 = dma.done [#allocation3], 512
        $region40: #{tpu_custom_call.1} parent=31 // pred_fallthru
          _
        %s186 = sand.u32 %s72, 1
        %s187 = scalar_lea.sflag [#allocation8], %s186
        %s188 = sand.u32 %s72, 1
        %s189 = smul.addr %s188, 8
        %s190 = scalar_lea.vmem [#allocation7], %s189
        // Predicated region
        $region41: #{tpu_custom_call.1} parent=31 // pred_check
          %p191 = pneg %p85
        $region42: #{tpu_custom_call.1} parent=31 // pred_check_branch
          %193 = sbr.rel (%p191) target = $region44
        $region43: #{tpu_custom_call.1} parent=31 // pred_region
          %194 = dma.done %s187, 128
        $region44: #{tpu_custom_call.1} parent=31 // pred_fallthru
          _
        %195 = sfence
        %p196 = pneg %p38
        %p197 = pneg %p35
        %p198 = pneg %p59
        %p199 = pneg %p56
        %s200 = sand.u32 %s72, 1
        %s201 = scalar_lea.sflag [#allocation8], %s200
        %s202 = sand.u32 %s72, 1
        %s203 = smul.addr %s202, 8
        %s204 = scalar_lea.vmem [#allocation7], %s203
        %p205 = pneg %p85
        %p206 = pneg %p82
        %p207 = pneg %p111
        %p208 = pneg %p108
        %s209 = sand.u32 %s98, 1
        %s210 = scalar_lea.sflag [#allocation4], %s209
        %s211 = sand.u32 %s98, 1
        %s212 = smul.addr %s211, 8
        %s213 = scalar_lea.vmem [#allocation9], %s212
        %v214 = vld [vmem:[%s190] sm:$0xff]
        %v216 = vcombine.high %v214, %v214
        %vm218 = vcmask 1043456
        %v219 = vsel %vm218, %v214, 0.0
        %v220 = vrot.slane %v219, 4
        %v221 = vadd.f32 %v219, %v220
        %v222 = vrot.slane %v221, 2
        %v223 = vadd.f32 %v221, %v222
        %v224 = vrot.slane %v223, 1
        %v225 = vadd.f32 %v223, %v224
        %v226 = vsel %vm218, %v216, 0.0
        %v227 = vrot.slane %v226, 4
        %v228 = vadd.f32 %v226, %v227
        %v229 = vrot.slane %v228, 2
        %v230 = vadd.f32 %v228, %v229
        %v231 = vrot.slane %v230, 1
        %v232 = vadd.f32 %v230, %v231
        %v233 = vmul.f32 %v225, 0.25
        %v234 = vmul.f32 %v232, 0.25
        %v235 = vsel %vm218, %v214, -inf
        %v236 = vrot.slane %v235, 4
        %v237 = vmax.f32 %v235, %v236
        %v238 = vrot.slane %v237, 2
        %v239 = vmax.f32 %v237, %v238
        %v240 = vrot.slane %v239, 1
        %v241 = vmax.f32 %v239, %v240
        %v242 = vsel %vm218, %v216, -inf
        %v243 = vrot.slane %v242, 4
        %v244 = vmax.f32 %v242, %v243
        %v245 = vrot.slane %v244, 2
        %v246 = vmax.f32 %v244, %v245
        %v247 = vrot.slane %v246, 1
        %v248 = vmax.f32 %v246, %v247
        %v249 = vld [vmem:[#allocation6] ss:$8 sm:$0x3]
        %250 = vrot.lane.b32.xlu0 %v233, 3
        %v251 = vpop.permute.xlu0 %250
        %252 = vrot.lane.b32.xlu0 %v234, 3
        %v253 = vpop.permute.xlu0 %252
        %v254 = vlaneseq
        %v255 = vand.u32 %v254, 127
        %vm256 = vcmp.lt.s32.totalorder %v255, 3
        %v257 = vsel %vm256, %v251, %v253
        %v258 = vsel %vm256, %v253, %v251
        %259 = vrot.lane.b32.xlu0 %v241, 3
        %v260 = vpop.permute.xlu0 %259
        %261 = vrot.lane.b32.xlu0 %v248, 3
        %v262 = vpop.permute.xlu0 %261
        %v263 = vsel %vm256, %v260, %v262
        %v264 = vsel %vm256, %v262, %v260
        %v266 = vlaneseq
        %v267 = vshrl.u32 %v266, 7
        %v268 = vsub.s32 0, %v267
        %v269 = vrot.slane %v249, %v268
        %v270 = vlaneseq
        %v271 = vshrl.u32 %v270, 7
        %v272 = vsub.s32 1, %v271
        %v273 = vrot.slane %v249, %v272
        %v276 = vmul.f32 %v258, %v269
        %v277 = vmul.f32 %v257, %v273
        %v278 = vmul.f32 %v264, %v269
        %v279 = vmul.f32 %v263, %v273
        %s280 = scalar_lea.vmem [#allocation6], 1
        %v281 = vld [vmem:[%s280] ss:$8 sm:$0x3]
        %282 = vrot.lane.b32.xlu0 %v233, 2
        %v283 = vpop.permute.xlu0 %282
        %284 = vrot.lane.b32.xlu0 %v234, 2
        %v285 = vpop.permute.xlu0 %284
        %vm286 = vcmp.lt.s32.totalorder %v255, 2
        %v287 = vsel %vm286, %v283, %v285
        %v288 = vsel %vm286, %v285, %v283
        %289 = vrot.lane.b32.xlu0 %v241, 2
        %v290 = vpop.permute.xlu0 %289
        %291 = vrot.lane.b32.xlu0 %v248, 2
        %v292 = vpop.permute.xlu0 %291
        %v293 = vsel %vm286, %v290, %v292
        %v294 = vsel %vm286, %v292, %v290
        %v296 = vlaneseq
        %v297 = vshrl.u32 %v296, 7
        %v298 = vsub.s32 0, %v297
        %v299 = vrot.slane %v281, %v298
        %v300 = vlaneseq
        %v301 = vshrl.u32 %v300, 7
        %v302 = vsub.s32 1, %v301
        %v303 = vrot.slane %v281, %v302
        %v306 = vmul.f32 %v288, %v299
        %v307 = vmul.f32 %v287, %v303
        %v308 = vmul.f32 %v294, %v299
        %v309 = vmul.f32 %v293, %v303
        %s310 = scalar_lea.vmem [#allocation6], 2
        %v311 = vld [vmem:[%s310] ss:$8 sm:$0x3]
        %312 = vrot.lane.b32.xlu0 %v233, 1
        %v313 = vpop.permute.xlu0 %312
        %314 = vrot.lane.b32.xlu0 %v234, 1
        %v315 = vpop.permute.xlu0 %314
        %vm316 = vcmp.lt.s32.totalorder %v255, 1
        %v317 = vsel %vm316, %v313, %v315
        %v318 = vsel %vm316, %v315, %v313
        %319 = vrot.lane.b32.xlu0 %v241, 1
        %v320 = vpop.permute.xlu0 %319
        %321 = vrot.lane.b32.xlu0 %v248, 1
        %v322 = vpop.permute.xlu0 %321
        %v323 = vsel %vm316, %v320, %v322
        %v324 = vsel %vm316, %v322, %v320
        %v326 = vlaneseq
        %v327 = vshrl.u32 %v326, 7
        %v328 = vsub.s32 0, %v327
        %v329 = vrot.slane %v311, %v328
        %v330 = vlaneseq
        %v331 = vshrl.u32 %v330, 7
        %v332 = vsub.s32 1, %v331
        %v333 = vrot.slane %v311, %v332
        %v336 = vmul.f32 %v318, %v329
        %v337 = vmul.f32 %v317, %v333
        %v338 = vmul.f32 %v324, %v329
        %v339 = vmul.f32 %v323, %v333
        %s340 = scalar_lea.vmem [#allocation6], 3
        %v341 = vld [vmem:[%s340] ss:$8 sm:$0x3]
        %v343 = vlaneseq
        %v344 = vshrl.u32 %v343, 7
        %v345 = vsub.s32 0, %v344
        %v346 = vrot.slane %v341, %v345
        %v347 = vlaneseq
        %v348 = vshrl.u32 %v347, 7
        %v349 = vsub.s32 1, %v348
        %v350 = vrot.slane %v341, %v349
        %v353 = vmul.f32 %v233, %v346
        %v354 = vmul.f32 %v234, %v350
        %v355 = vmul.f32 %v241, %v346
        %v356 = vmul.f32 %v248, %v350
        %s357 = scalar_lea.vmem [#allocation6], 4
        %v358 = vld [vmem:[%s357] ss:$8 sm:$0x3]
        %359 = vrot.lane.b32.xlu0 %v233, 127
        %v360 = vpop.permute.xlu0 %359
        %361 = vrot.lane.b32.xlu0 %v234, 127
        %v362 = vpop.permute.xlu0 %361
        %vm363 = vcmp.lt.s32.totalorder %v255, 127
        %v364 = vsel %vm363, %v360, %v362
        %v365 = vsel %vm363, %v362, %v360
        %366 = vrot.lane.b32.xlu0 %v241, 127
        %v367 = vpop.permute.xlu0 %366
        %368 = vrot.lane.b32.xlu0 %v248, 127
        %v369 = vpop.permute.xlu0 %368
        %v370 = vsel %vm363, %v367, %v369
        %v371 = vsel %vm363, %v369, %v367
        %v373 = vlaneseq
        %v374 = vshrl.u32 %v373, 7
        %v375 = vsub.s32 0, %v374
        %v376 = vrot.slane %v358, %v375
        %v377 = vlaneseq
        %v378 = vshrl.u32 %v377, 7
        %v379 = vsub.s32 1, %v378
        %v380 = vrot.slane %v358, %v379
        %v383 = vmul.f32 %v364, %v376
        %v384 = vmul.f32 %v365, %v380
        %v385 = vmul.f32 %v370, %v376
        %v386 = vmul.f32 %v371, %v380
        %s387 = scalar_lea.vmem [#allocation6], 5
        %v388 = vld [vmem:[%s387] ss:$8 sm:$0x3]
        %389 = vrot.lane.b32.xlu0 %v233, 126
        %v390 = vpop.permute.xlu0 %389
        %391 = vrot.lane.b32.xlu0 %v234, 126
        %v392 = vpop.permute.xlu0 %391
        %vm393 = vcmp.lt.s32.totalorder %v255, 126
        %v394 = vsel %vm393, %v390, %v392
        %v395 = vsel %vm393, %v392, %v390
        %396 = vrot.lane.b32.xlu0 %v241, 126
        %v397 = vpop.permute.xlu0 %396
        %398 = vrot.lane.b32.xlu0 %v248, 126
        %v399 = vpop.permute.xlu0 %398
        %v400 = vsel %vm393, %v397, %v399
        %v401 = vsel %vm393, %v399, %v397
        %v403 = vlaneseq
        %v404 = vshrl.u32 %v403, 7
        %v405 = vsub.s32 0, %v404
        %v406 = vrot.slane %v388, %v405
        %v407 = vlaneseq
        %v408 = vshrl.u32 %v407, 7
        %v409 = vsub.s32 1, %v408
        %v410 = vrot.slane %v388, %v409
        %v413 = vmul.f32 %v394, %v406
        %v414 = vmul.f32 %v395, %v410
        %v415 = vmul.f32 %v400, %v406
        %v416 = vmul.f32 %v401, %v410
        %s417 = scalar_lea.vmem [#allocation6], 6
        %v418 = vld [vmem:[%s417] ss:$8 sm:$0x3]
        %419 = vrot.lane.b32.xlu0 %v233, 125
        %v420 = vpop.permute.xlu0 %419
        %421 = vrot.lane.b32.xlu0 %v234, 125
        %v422 = vpop.permute.xlu0 %421
        %vm423 = vcmp.lt.s32.totalorder %v255, 125
        %v424 = vsel %vm423, %v420, %v422
        %v425 = vsel %vm423, %v422, %v420
        %426 = vrot.lane.b32.xlu0 %v241, 125
        %v427 = vpop.permute.xlu0 %426
        %428 = vrot.lane.b32.xlu0 %v248, 125
        %v429 = vpop.permute.xlu0 %428
        %v430 = vsel %vm423, %v427, %v429
        %v431 = vsel %vm423, %v429, %v427
        %v433 = vlaneseq
        %v434 = vshrl.u32 %v433, 7
        %v435 = vsub.s32 0, %v434
        %v436 = vrot.slane %v418, %v435
        %v437 = vlaneseq
        %v438 = vshrl.u32 %v437, 7
        %v439 = vsub.s32 1, %v438
        %v440 = vrot.slane %v418, %v439
        %v443 = vmul.f32 %v424, %v436
        %v444 = vmul.f32 %v425, %v440
        %v445 = vmul.f32 %v430, %v436
        %v446 = vmul.f32 %v431, %v440
        %s447 = sld [smem:[#allocation2]]
        %v448 = vstv %s447
        %v449 = vmul.f32 %v448, %v276
        %v450 = vmul.f32 %v448, %v277
        %s451 = sld [smem:[#allocation2 + $0x31]]
        %v452 = vstv %s451
        %v453 = vmul.f32 %v452, %v278
        %v454 = vmul.f32 %v452, %v279
        %s455 = sld [smem:[#allocation2 + $0x1]]
        %v456 = vstv %s455
        %v457 = vmul.f32 %v456, %v306
        %v458 = vmul.f32 %v456, %v307
        %v459 = vadd.f32 %v449, %v457
        %v460 = vadd.f32 %v450, %v458
        %s461 = sld [smem:[#allocation2 + $0x32]]
        %v462 = vstv %s461
        %v463 = vmul.f32 %v462, %v308
        %v464 = vmul.f32 %v462, %v309
        %v465 = vadd.f32 %v453, %v463
        %v466 = vadd.f32 %v454, %v464
        %s467 = sld [smem:[#allocation2 + $0x2]]
        %v468 = vstv %s467
        %v469 = vmul.f32 %v468, %v336
        %v470 = vmul.f32 %v468, %v337
        %v471 = vadd.f32 %v459, %v469
        %v472 = vadd.f32 %v460, %v470
        %s473 = sld [smem:[#allocation2 + $0x33]]
        %v474 = vstv %s473
        %v475 = vmul.f32 %v474, %v338
        %v476 = vmul.f32 %v474, %v339
        %v477 = vadd.f32 %v465, %v475
        %v478 = vadd.f32 %v466, %v476
        %s479 = sld [smem:[#allocation2 + $0x3]]
        %v480 = vstv %s479
        %v481 = vmul.f32 %v480, %v353
        %v482 = vmul.f32 %v480, %v354
        %v483 = vadd.f32 %v471, %v481
        %v484 = vadd.f32 %v472, %v482
        %s485 = sld [smem:[#allocation2 + $0x34]]
        %v486 = vstv %s485
        %v487 = vmul.f32 %v486, %v355
        %v488 = vmul.f32 %v486, %v356
        %v489 = vadd.f32 %v477, %v487
        %v490 = vadd.f32 %v478, %v488
        %s491 = sld [smem:[#allocation2 + $0x4]]
        %v492 = vstv %s491
        %v493 = vmul.f32 %v492, %v383
        %v494 = vmul.f32 %v492, %v384
        %v495 = vadd.f32 %v483, %v493
        %v496 = vadd.f32 %v484, %v494
        %s497 = sld [smem:[#allocation2 + $0x35]]
        %v498 = vstv %s497
        %v499 = vmul.f32 %v498, %v385
        %v500 = vmul.f32 %v498, %v386
        %v501 = vadd.f32 %v489, %v499
        %v502 = vadd.f32 %v490, %v500
        %s503 = sld [smem:[#allocation2 + $0x5]]
        %v504 = vstv %s503
        %v505 = vmul.f32 %v504, %v413
        %v506 = vmul.f32 %v504, %v414
        %v507 = vadd.f32 %v495, %v505
        %v508 = vadd.f32 %v496, %v506
        %s509 = sld [smem:[#allocation2 + $0x36]]
        %v510 = vstv %s509
        %v511 = vmul.f32 %v510, %v415
        %v512 = vmul.f32 %v510, %v416
        %v513 = vadd.f32 %v501, %v511
        %v514 = vadd.f32 %v502, %v512
        %s515 = sld [smem:[#allocation2 + $0x6]]
        %v516 = vstv %s515
        %v517 = vmul.f32 %v516, %v443
        %v518 = vmul.f32 %v516, %v444
        %v519 = vadd.f32 %v507, %v517
        %v520 = vadd.f32 %v508, %v518
        %s521 = sld [smem:[#allocation2 + $0x37]]
        %v522 = vstv %s521
        %v523 = vmul.f32 %v522, %v445
        %v524 = vmul.f32 %v522, %v446
        %v525 = vadd.f32 %v513, %v523
        %v526 = vadd.f32 %v514, %v524
        %v527 = vadd.f32 %v519, %v525
        %v528 = vadd.f32 %v520, %v526
        %s529 = scalar_lea.vmem [#allocation6], 7
        %v530 = vld [vmem:[%s529] ss:$8 sm:$0x3]
        %531 = vrot.lane.b32.xlu0 %v527, 48
        %v532 = vpop.permute.xlu0 %531
        %533 = vrot.lane.b32.xlu0 %v528, 48
        %v534 = vpop.permute.xlu0 %533
        %vm535 = vcmp.lt.s32.totalorder %v255, 48
        %v536 = vsel %vm535, %v532, %v534
        %v537 = vsel %vm535, %v534, %v532
        %v539 = vlaneseq
        %v540 = vshrl.u32 %v539, 7
        %v541 = vsub.s32 0, %v540
        %v542 = vrot.slane %v530, %v541
        %v543 = vlaneseq
        %v544 = vshrl.u32 %v543, 7
        %v545 = vsub.s32 1, %v544
        %v546 = vrot.slane %v530, %v545
        %v549 = vmul.f32 %v537, %v542
        %v550 = vmul.f32 %v536, %v546
        %s551 = sld [smem:[#allocation2 + $0x7]]
        %v552 = vstv %s551
        %v553 = vmul.f32 %v552, %v276
        %v554 = vmul.f32 %v552, %v277
        %s555 = sld [smem:[#allocation2 + $0x38]]
        %v556 = vstv %s555
        %v557 = vmul.f32 %v556, %v278
        %v558 = vmul.f32 %v556, %v279
        %s559 = sld [smem:[#allocation2 + $0x8]]
        %v560 = vstv %s559
        %v561 = vmul.f32 %v560, %v306
        %v562 = vmul.f32 %v560, %v307
        %v563 = vadd.f32 %v553, %v561
        %v564 = vadd.f32 %v554, %v562
        %s565 = sld [smem:[#allocation2 + $0x39]]
        %v566 = vstv %s565
        %v567 = vmul.f32 %v566, %v308
        %v568 = vmul.f32 %v566, %v309
        %v569 = vadd.f32 %v557, %v567
        %v570 = vadd.f32 %v558, %v568
        %s571 = sld [smem:[#allocation2 + $0x9]]
        %v572 = vstv %s571
        %v573 = vmul.f32 %v572, %v336
        %v574 = vmul.f32 %v572, %v337
        %v575 = vadd.f32 %v563, %v573
        %v576 = vadd.f32 %v564, %v574
        %s577 = sld [smem:[#allocation2 + $0x3a]]
        %v578 = vstv %s577
        %v579 = vmul.f32 %v578, %v338
        %v580 = vmul.f32 %v578, %v339
        %v581 = vadd.f32 %v569, %v579
        %v582 = vadd.f32 %v570, %v580
        %s583 = sld [smem:[#allocation2 + $0xa]]
        %v584 = vstv %s583
        %v585 = vmul.f32 %v584, %v353
        %v586 = vmul.f32 %v584, %v354
        %v587 = vadd.f32 %v575, %v585
        %v588 = vadd.f32 %v576, %v586
        %s589 = sld [smem:[#allocation2 + $0x3b]]
        %v590 = vstv %s589
        %v591 = vmul.f32 %v590, %v355
        %v592 = vmul.f32 %v590, %v356
        %v593 = vadd.f32 %v581, %v591
        %v594 = vadd.f32 %v582, %v592
        %s595 = sld [smem:[#allocation2 + $0xb]]
        %v596 = vstv %s595
        %v597 = vmul.f32 %v596, %v383
        %v598 = vmul.f32 %v596, %v384
        %v599 = vadd.f32 %v587, %v597
        %v600 = vadd.f32 %v588, %v598
        %s601 = sld [smem:[#allocation2 + $0x3c]]
        %v602 = vstv %s601
        %v603 = vmul.f32 %v602, %v385
        %v604 = vmul.f32 %v602, %v386
        %v605 = vadd.f32 %v593, %v603
        %v606 = vadd.f32 %v594, %v604
        %s607 = sld [smem:[#allocation2 + $0xc]]
        %v608 = vstv %s607
        %v609 = vmul.f32 %v608, %v413
        %v610 = vmul.f32 %v608, %v414
        %v611 = vadd.f32 %v599, %v609
        %v612 = vadd.f32 %v600, %v610
        %s613 = sld [smem:[#allocation2 + $0x3d]]
        %v614 = vstv %s613
        %v615 = vmul.f32 %v614, %v415
        %v616 = vmul.f32 %v614, %v416
        %v617 = vadd.f32 %v605, %v615
        %v618 = vadd.f32 %v606, %v616
        %s619 = sld [smem:[#allocation2 + $0xd]]
        %v620 = vstv %s619
        %v621 = vmul.f32 %v620, %v443
        %v622 = vmul.f32 %v620, %v444
        %v623 = vadd.f32 %v611, %v621
        %v624 = vadd.f32 %v612, %v622
        %s625 = sld [smem:[#allocation2 + $0x3e]]
        %v626 = vstv %s625
        %v627 = vmul.f32 %v626, %v445
        %v628 = vmul.f32 %v626, %v446
        %v629 = vadd.f32 %v617, %v627
        %v630 = vadd.f32 %v618, %v628
        %v631 = vadd.f32 %v623, %v629
        %v632 = vadd.f32 %v624, %v630
        %s633 = scalar_lea.vmem [#allocation6], 16
        %v634 = vld [vmem:[%s633] ss:$8 sm:$0x3]
        %635 = vrot.lane.b32.xlu0 %v631, 32
        %v636 = vpop.permute.xlu0 %635
        %637 = vrot.lane.b32.xlu0 %v632, 32
        %v638 = vpop.permute.xlu0 %637
        %vm639 = vcmp.lt.s32.totalorder %v255, 32
        %v640 = vsel %vm639, %v636, %v638
        %v641 = vsel %vm639, %v638, %v636
        %v643 = vlaneseq
        %v644 = vshrl.u32 %v643, 7
        %v645 = vsub.s32 0, %v644
        %v646 = vrot.slane %v634, %v645
        %v647 = vlaneseq
        %v648 = vshrl.u32 %v647, 7
        %v649 = vsub.s32 1, %v648
        %v650 = vrot.slane %v634, %v649
        %v653 = vmul.f32 %v641, %v646
        %v654 = vmul.f32 %v640, %v650
        %v655 = vadd.f32 %v549, %v653
        %v656 = vadd.f32 %v550, %v654
        %s657 = sld [smem:[#allocation2 + $0xe]]
        %v658 = vstv %s657
        %v659 = vmul.f32 %v658, %v276
        %v660 = vmul.f32 %v658, %v277
        %s661 = sld [smem:[#allocation2 + $0x3f]]
        %v662 = vstv %s661
        %v663 = vmul.f32 %v662, %v278
        %v664 = vmul.f32 %v662, %v279
        %s665 = sld [smem:[#allocation2 + $0xf]]
        %v666 = vstv %s665
        %v667 = vmul.f32 %v666, %v306
        %v668 = vmul.f32 %v666, %v307
        %v669 = vadd.f32 %v659, %v667
        %v670 = vadd.f32 %v660, %v668
        %s671 = sld [smem:[#allocation2 + $0x40]]
        %v672 = vstv %s671
        %v673 = vmul.f32 %v672, %v308
        %v674 = vmul.f32 %v672, %v309
        %v675 = vadd.f32 %v663, %v673
        %v676 = vadd.f32 %v664, %v674
        %s677 = sld [smem:[#allocation2 + $0x10]]
        %v678 = vstv %s677
        %v679 = vmul.f32 %v678, %v336
        %v680 = vmul.f32 %v678, %v337
        %v681 = vadd.f32 %v669, %v679
        %v682 = vadd.f32 %v670, %v680
        %s683 = sld [smem:[#allocation2 + $0x41]]
        %v684 = vstv %s683
        %v685 = vmul.f32 %v684, %v338
        %v686 = vmul.f32 %v684, %v339
        %v687 = vadd.f32 %v675, %v685
        %v688 = vadd.f32 %v676, %v686
        %s689 = sld [smem:[#allocation2 + $0x11]]
        %v690 = vstv %s689
        %v691 = vmul.f32 %v690, %v353
        %v692 = vmul.f32 %v690, %v354
        %v693 = vadd.f32 %v681, %v691
        %v694 = vadd.f32 %v682, %v692
        %s695 = sld [smem:[#allocation2 + $0x42]]
        %v696 = vstv %s695
        %v697 = vmul.f32 %v696, %v355
        %v698 = vmul.f32 %v696, %v356
        %v699 = vadd.f32 %v687, %v697
        %v700 = vadd.f32 %v688, %v698
        %s701 = sld [smem:[#allocation2 + $0x12]]
        %v702 = vstv %s701
        %v703 = vmul.f32 %v702, %v383
        %v704 = vmul.f32 %v702, %v384
        %v705 = vadd.f32 %v693, %v703
        %v706 = vadd.f32 %v694, %v704
        %s707 = sld [smem:[#allocation2 + $0x43]]
        %v708 = vstv %s707
        %v709 = vmul.f32 %v708, %v385
        %v710 = vmul.f32 %v708, %v386
        %v711 = vadd.f32 %v699, %v709
        %v712 = vadd.f32 %v700, %v710
        %s713 = sld [smem:[#allocation2 + $0x13]]
        %v714 = vstv %s713
        %v715 = vmul.f32 %v714, %v413
        %v716 = vmul.f32 %v714, %v414
        %v717 = vadd.f32 %v705, %v715
        %v718 = vadd.f32 %v706, %v716
        %s719 = sld [smem:[#allocation2 + $0x44]]
        %v720 = vstv %s719
        %v721 = vmul.f32 %v720, %v415
        %v722 = vmul.f32 %v720, %v416
        %v723 = vadd.f32 %v711, %v721
        %v724 = vadd.f32 %v712, %v722
        %s725 = sld [smem:[#allocation2 + $0x14]]
        %v726 = vstv %s725
        %v727 = vmul.f32 %v726, %v443
        %v728 = vmul.f32 %v726, %v444
        %v729 = vadd.f32 %v717, %v727
        %v730 = vadd.f32 %v718, %v728
        %s731 = sld [smem:[#allocation2 + $0x45]]
        %v732 = vstv %s731
        %v733 = vmul.f32 %v732, %v445
        %v734 = vmul.f32 %v732, %v446
        %v735 = vadd.f32 %v723, %v733
        %v736 = vadd.f32 %v724, %v734
        %v737 = vadd.f32 %v729, %v735
        %v738 = vadd.f32 %v730, %v736
        %s739 = scalar_lea.vmem [#allocation6], 17
        %v740 = vld [vmem:[%s739] ss:$8 sm:$0x3]
        %741 = vrot.lane.b32.xlu0 %v737, 16
        %v742 = vpop.permute.xlu0 %741
        %743 = vrot.lane.b32.xlu0 %v738, 16
        %v744 = vpop.permute.xlu0 %743
        %vm745 = vcmp.lt.s32.totalorder %v255, 16
        %v746 = vsel %vm745, %v742, %v744
        %v747 = vsel %vm745, %v744, %v742
        %v749 = vlaneseq
        %v750 = vshrl.u32 %v749, 7
        %v751 = vsub.s32 0, %v750
        %v752 = vrot.slane %v740, %v751
        %v753 = vlaneseq
        %v754 = vshrl.u32 %v753, 7
        %v755 = vsub.s32 1, %v754
        %v756 = vrot.slane %v740, %v755
        %v759 = vmul.f32 %v747, %v752
        %v760 = vmul.f32 %v746, %v756
        %v761 = vadd.f32 %v655, %v759
        %v762 = vadd.f32 %v656, %v760
        %s763 = sld [smem:[#allocation2 + $0x15]]
        %v764 = vstv %s763
        %v765 = vmul.f32 %v764, %v276
        %v766 = vmul.f32 %v764, %v277
        %s767 = sld [smem:[#allocation2 + $0x46]]
        %v768 = vstv %s767
        %v769 = vmul.f32 %v768, %v278
        %v770 = vmul.f32 %v768, %v279
        %s771 = sld [smem:[#allocation2 + $0x16]]
        %v772 = vstv %s771
        %v773 = vmul.f32 %v772, %v306
        %v774 = vmul.f32 %v772, %v307
        %v775 = vadd.f32 %v765, %v773
        %v776 = vadd.f32 %v766, %v774
        %s777 = sld [smem:[#allocation2 + $0x47]]
        %v778 = vstv %s777
        %v779 = vmul.f32 %v778, %v308
        %v780 = vmul.f32 %v778, %v309
        %v781 = vadd.f32 %v769, %v779
        %v782 = vadd.f32 %v770, %v780
        %s783 = sld [smem:[#allocation2 + $0x17]]
        %v784 = vstv %s783
        %v785 = vmul.f32 %v784, %v336
        %v786 = vmul.f32 %v784, %v337
        %v787 = vadd.f32 %v775, %v785
        %v788 = vadd.f32 %v776, %v786
        %s789 = sld [smem:[#allocation2 + $0x48]]
        %v790 = vstv %s789
        %v791 = vmul.f32 %v790, %v338
        %v792 = vmul.f32 %v790, %v339
        %v793 = vadd.f32 %v781, %v791
        %v794 = vadd.f32 %v782, %v792
        %s795 = sld [smem:[#allocation2 + $0x18]]
        %v796 = vstv %s795
        %v797 = vmul.f32 %v796, %v353
        %v798 = vmul.f32 %v796, %v354
        %v799 = vadd.f32 %v787, %v797
        %v800 = vadd.f32 %v788, %v798
        %s801 = sld [smem:[#allocation2 + $0x49]]
        %v802 = vstv %s801
        %v803 = vmul.f32 %v802, %v355
        %v804 = vmul.f32 %v802, %v356
        %v805 = vadd.f32 %v793, %v803
        %v806 = vadd.f32 %v794, %v804
        %s807 = sld [smem:[#allocation2 + $0x19]]
        %v808 = vstv %s807
        %v809 = vmul.f32 %v808, %v383
        %v810 = vmul.f32 %v808, %v384
        %v811 = vadd.f32 %v799, %v809
        %v812 = vadd.f32 %v800, %v810
        %s813 = sld [smem:[#allocation2 + $0x4a]]
        %v814 = vstv %s813
        %v815 = vmul.f32 %v814, %v385
        %v816 = vmul.f32 %v814, %v386
        %v817 = vadd.f32 %v805, %v815
        %v818 = vadd.f32 %v806, %v816
        %s819 = sld [smem:[#allocation2 + $0x1a]]
        %v820 = vstv %s819
        %v821 = vmul.f32 %v820, %v413
        %v822 = vmul.f32 %v820, %v414
        %v823 = vadd.f32 %v811, %v821
        %v824 = vadd.f32 %v812, %v822
        %s825 = sld [smem:[#allocation2 + $0x4b]]
        %v826 = vstv %s825
        %v827 = vmul.f32 %v826, %v415
        %v828 = vmul.f32 %v826, %v416
        %v829 = vadd.f32 %v817, %v827
        %v830 = vadd.f32 %v818, %v828
        %s831 = sld [smem:[#allocation2 + $0x1b]]
        %v832 = vstv %s831
        %v833 = vmul.f32 %v832, %v443
        %v834 = vmul.f32 %v832, %v444
        %v835 = vadd.f32 %v823, %v833
        %v836 = vadd.f32 %v824, %v834
        %s837 = sld [smem:[#allocation2 + $0x4c]]
        %v838 = vstv %s837
        %v839 = vmul.f32 %v838, %v445
        %v840 = vmul.f32 %v838, %v446
        %v841 = vadd.f32 %v829, %v839
        %v842 = vadd.f32 %v830, %v840
        %v843 = vadd.f32 %v835, %v841
        %v844 = vadd.f32 %v836, %v842
        %s845 = scalar_lea.vmem [#allocation6], 18
        %v846 = vld [vmem:[%s845] ss:$8 sm:$0x3]
        %v848 = vlaneseq
        %v849 = vshrl.u32 %v848, 7
        %v850 = vsub.s32 0, %v849
        %v851 = vrot.slane %v846, %v850
        %v852 = vlaneseq
        %v853 = vshrl.u32 %v852, 7
        %v854 = vsub.s32 1, %v853
        %v855 = vrot.slane %v846, %v854
        %v858 = vmul.f32 %v843, %v851
        %v859 = vmul.f32 %v844, %v855
        %v860 = vadd.f32 %v761, %v858
        %v861 = vadd.f32 %v762, %v859
        %s862 = sld [smem:[#allocation2 + $0x1c]]
        %v863 = vstv %s862
        %v864 = vmul.f32 %v863, %v276
        %v865 = vmul.f32 %v863, %v277
        %s866 = sld [smem:[#allocation2 + $0x4d]]
        %v867 = vstv %s866
        %v868 = vmul.f32 %v867, %v278
        %v869 = vmul.f32 %v867, %v279
        %s870 = sld [smem:[#allocation2 + $0x1d]]
        %v871 = vstv %s870
        %v872 = vmul.f32 %v871, %v306
        %v873 = vmul.f32 %v871, %v307
        %v874 = vadd.f32 %v864, %v872
        %v875 = vadd.f32 %v865, %v873
        %s876 = sld [smem:[#allocation2 + $0x4e]]
        %v877 = vstv %s876
        %v878 = vmul.f32 %v877, %v308
        %v879 = vmul.f32 %v877, %v309
        %v880 = vadd.f32 %v868, %v878
        %v881 = vadd.f32 %v869, %v879
        %s882 = sld [smem:[#allocation2 + $0x1e]]
        %v883 = vstv %s882
        %v884 = vmul.f32 %v883, %v336
        %v885 = vmul.f32 %v883, %v337
        %v886 = vadd.f32 %v874, %v884
        %v887 = vadd.f32 %v875, %v885
        %s888 = sld [smem:[#allocation2 + $0x4f]]
        %v889 = vstv %s888
        %v890 = vmul.f32 %v889, %v338
        %v891 = vmul.f32 %v889, %v339
        %v892 = vadd.f32 %v880, %v890
        %v893 = vadd.f32 %v881, %v891
        %s894 = sld [smem:[#allocation2 + $0x1f]]
        %v895 = vstv %s894
        %v896 = vmul.f32 %v895, %v353
        %v897 = vmul.f32 %v895, %v354
        %v898 = vadd.f32 %v886, %v896
        %v899 = vadd.f32 %v887, %v897
        %s900 = sld [smem:[#allocation2 + $0x50]]
        %v901 = vstv %s900
        %v902 = vmul.f32 %v901, %v355
        %v903 = vmul.f32 %v901, %v356
        %v904 = vadd.f32 %v892, %v902
        %v905 = vadd.f32 %v893, %v903
        %s906 = sld [smem:[#allocation2 + $0x20]]
        %v907 = vstv %s906
        %v908 = vmul.f32 %v907, %v383
        %v909 = vmul.f32 %v907, %v384
        %v910 = vadd.f32 %v898, %v908
        %v911 = vadd.f32 %v899, %v909
        %s912 = sld [smem:[#allocation2 + $0x51]]
        %v913 = vstv %s912
        %v914 = vmul.f32 %v913, %v385
        %v915 = vmul.f32 %v913, %v386
        %v916 = vadd.f32 %v904, %v914
        %v917 = vadd.f32 %v905, %v915
        %s918 = sld [smem:[#allocation2 + $0x21]]
        %v919 = vstv %s918
        %v920 = vmul.f32 %v919, %v413
        %v921 = vmul.f32 %v919, %v414
        %v922 = vadd.f32 %v910, %v920
        %v923 = vadd.f32 %v911, %v921
        %s924 = sld [smem:[#allocation2 + $0x52]]
        %v925 = vstv %s924
        %v926 = vmul.f32 %v925, %v415
        %v927 = vmul.f32 %v925, %v416
        %v928 = vadd.f32 %v916, %v926
        %v929 = vadd.f32 %v917, %v927
        %s930 = sld [smem:[#allocation2 + $0x22]]
        %v931 = vstv %s930
        %v932 = vmul.f32 %v931, %v443
        %v933 = vmul.f32 %v931, %v444
        %v934 = vadd.f32 %v922, %v932
        %v935 = vadd.f32 %v923, %v933
        %s936 = sld [smem:[#allocation2 + $0x53]]
        %v937 = vstv %s936
        %v938 = vmul.f32 %v937, %v445
        %v939 = vmul.f32 %v937, %v446
        %v940 = vadd.f32 %v928, %v938
        %v941 = vadd.f32 %v929, %v939
        %v942 = vadd.f32 %v934, %v940
        %v943 = vadd.f32 %v935, %v941
        %s944 = scalar_lea.vmem [#allocation6], 19
        %v945 = vld [vmem:[%s944] ss:$8 sm:$0x3]
        %946 = vrot.lane.b32.xlu0 %v942, 112
        %v947 = vpop.permute.xlu0 %946
        %948 = vrot.lane.b32.xlu0 %v943, 112
        %v949 = vpop.permute.xlu0 %948
        %vm950 = vcmp.lt.s32.totalorder %v255, 112
        %v951 = vsel %vm950, %v947, %v949
        %v952 = vsel %vm950, %v949, %v947
        %v954 = vlaneseq
        %v955 = vshrl.u32 %v954, 7
        %v956 = vsub.s32 0, %v955
        %v957 = vrot.slane %v945, %v956
        %v958 = vlaneseq
        %v959 = vshrl.u32 %v958, 7
        %v960 = vsub.s32 1, %v959
        %v961 = vrot.slane %v945, %v960
        %v964 = vmul.f32 %v951, %v957
        %v965 = vmul.f32 %v952, %v961
        %v966 = vadd.f32 %v860, %v964
        %v967 = vadd.f32 %v861, %v965
        %s968 = sld [smem:[#allocation2 + $0x23]]
        %v969 = vstv %s968
        %v970 = vmul.f32 %v969, %v276
        %v971 = vmul.f32 %v969, %v277
        %s972 = sld [smem:[#allocation2 + $0x54]]
        %v973 = vstv %s972
        %v974 = vmul.f32 %v973, %v278
        %v975 = vmul.f32 %v973, %v279
        %s976 = sld [smem:[#allocation2 + $0x24]]
        %v977 = vstv %s976
        %v978 = vmul.f32 %v977, %v306
        %v979 = vmul.f32 %v977, %v307
        %v980 = vadd.f32 %v970, %v978
        %v981 = vadd.f32 %v971, %v979
        %s982 = sld [smem:[#allocation2 + $0x55]]
        %v983 = vstv %s982
        %v984 = vmul.f32 %v983, %v308
        %v985 = vmul.f32 %v983, %v309
        %v986 = vadd.f32 %v974, %v984
        %v987 = vadd.f32 %v975, %v985
        %s988 = sld [smem:[#allocation2 + $0x25]]
        %v989 = vstv %s988
        %v990 = vmul.f32 %v989, %v336
        %v991 = vmul.f32 %v989, %v337
        %v992 = vadd.f32 %v980, %v990
        %v993 = vadd.f32 %v981, %v991
        %s994 = sld [smem:[#allocation2 + $0x56]]
        %v995 = vstv %s994
        %v996 = vmul.f32 %v995, %v338
        %v997 = vmul.f32 %v995, %v339
        %v998 = vadd.f32 %v986, %v996
        %v999 = vadd.f32 %v987, %v997
        %s1000 = sld [smem:[#allocation2 + $0x26]]
        %v1001 = vstv %s1000
        %v1002 = vmul.f32 %v1001, %v353
        %v1003 = vmul.f32 %v1001, %v354
        %v1004 = vadd.f32 %v992, %v1002
        %v1005 = vadd.f32 %v993, %v1003
        %s1006 = sld [smem:[#allocation2 + $0x57]]
        %v1007 = vstv %s1006
        %v1008 = vmul.f32 %v1007, %v355
        %v1009 = vmul.f32 %v1007, %v356
        %v1010 = vadd.f32 %v998, %v1008
        %v1011 = vadd.f32 %v999, %v1009
        %s1012 = sld [smem:[#allocation2 + $0x27]]
        %v1013 = vstv %s1012
        %v1014 = vmul.f32 %v1013, %v383
        %v1015 = vmul.f32 %v1013, %v384
        %v1016 = vadd.f32 %v1004, %v1014
        %v1017 = vadd.f32 %v1005, %v1015
        %s1018 = sld [smem:[#allocation2 + $0x58]]
        %v1019 = vstv %s1018
        %v1020 = vmul.f32 %v1019, %v385
        %v1021 = vmul.f32 %v1019, %v386
        %v1022 = vadd.f32 %v1010, %v1020
        %v1023 = vadd.f32 %v1011, %v1021
        %s1024 = sld [smem:[#allocation2 + $0x28]]
        %v1025 = vstv %s1024
        %v1026 = vmul.f32 %v1025, %v413
        %v1027 = vmul.f32 %v1025, %v414
        %v1028 = vadd.f32 %v1016, %v1026
        %v1029 = vadd.f32 %v1017, %v1027
        %s1030 = sld [smem:[#allocation2 + $0x59]]
        %v1031 = vstv %s1030
        %v1032 = vmul.f32 %v1031, %v415
        %v1033 = vmul.f32 %v1031, %v416
        %v1034 = vadd.f32 %v1022, %v1032
        %v1035 = vadd.f32 %v1023, %v1033
        %s1036 = sld [smem:[#allocation2 + $0x29]]
        %v1037 = vstv %s1036
        %v1038 = vmul.f32 %v1037, %v443
        %v1039 = vmul.f32 %v1037, %v444
        %v1040 = vadd.f32 %v1028, %v1038
        %v1041 = vadd.f32 %v1029, %v1039
        %s1042 = sld [smem:[#allocation2 + $0x5a]]
        %v1043 = vstv %s1042
        %v1044 = vmul.f32 %v1043, %v445
        %v1045 = vmul.f32 %v1043, %v446
        %v1046 = vadd.f32 %v1034, %v1044
        %v1047 = vadd.f32 %v1035, %v1045
        %v1048 = vadd.f32 %v1040, %v1046
        %v1049 = vadd.f32 %v1041, %v1047
        %s1050 = scalar_lea.vmem [#allocation6], 20
        %v1051 = vld [vmem:[%s1050] ss:$8 sm:$0x3]
        %1052 = vrot.lane.b32.xlu0 %v1048, 96
        %v1053 = vpop.permute.xlu0 %1052
        %1054 = vrot.lane.b32.xlu0 %v1049, 96
        %v1055 = vpop.permute.xlu0 %1054
        %vm1056 = vcmp.lt.s32.totalorder %v255, 96
        %v1057 = vsel %vm1056, %v1053, %v1055
        %v1058 = vsel %vm1056, %v1055, %v1053
        %v1060 = vlaneseq
        %v1061 = vshrl.u32 %v1060, 7
        %v1062 = vsub.s32 0, %v1061
        %v1063 = vrot.slane %v1051, %v1062
        %v1064 = vlaneseq
        %v1065 = vshrl.u32 %v1064, 7
        %v1066 = vsub.s32 1, %v1065
        %v1067 = vrot.slane %v1051, %v1066
        %v1070 = vmul.f32 %v1057, %v1063
        %v1071 = vmul.f32 %v1058, %v1067
        %v1072 = vadd.f32 %v966, %v1070
        %v1073 = vadd.f32 %v967, %v1071
        %s1074 = sld [smem:[#allocation2 + $0x2a]]
        %v1075 = vstv %s1074
        %v1076 = vmul.f32 %v1075, %v276
        %v1077 = vmul.f32 %v1075, %v277
        %s1078 = sld [smem:[#allocation2 + $0x5b]]
        %v1079 = vstv %s1078
        %v1080 = vmul.f32 %v1079, %v278
        %v1081 = vmul.f32 %v1079, %v279
        %s1082 = sld [smem:[#allocation2 + $0x2b]]
        %v1083 = vstv %s1082
        %v1084 = vmul.f32 %v1083, %v306
        %v1085 = vmul.f32 %v1083, %v307
        %v1086 = vadd.f32 %v1076, %v1084
        %v1087 = vadd.f32 %v1077, %v1085
        %s1088 = sld [smem:[#allocation2 + $0x5c]]
        %v1089 = vstv %s1088
        %v1090 = vmul.f32 %v1089, %v308
        %v1091 = vmul.f32 %v1089, %v309
        %v1092 = vadd.f32 %v1080, %v1090
        %v1093 = vadd.f32 %v1081, %v1091
        %s1094 = sld [smem:[#allocation2 + $0x2c]]
        %v1095 = vstv %s1094
        %v1096 = vmul.f32 %v1095, %v336
        %v1097 = vmul.f32 %v1095, %v337
        %v1098 = vadd.f32 %v1086, %v1096
        %v1099 = vadd.f32 %v1087, %v1097
        %s1100 = sld [smem:[#allocation2 + $0x5d]]
        %v1101 = vstv %s1100
        %v1102 = vmul.f32 %v1101, %v338
        %v1103 = vmul.f32 %v1101, %v339
        %v1104 = vadd.f32 %v1092, %v1102
        %v1105 = vadd.f32 %v1093, %v1103
        %s1106 = sld [smem:[#allocation2 + $0x2d]]
        %v1107 = vstv %s1106
        %v1108 = vmul.f32 %v1107, %v353
        %v1109 = vmul.f32 %v1107, %v354
        %v1110 = vadd.f32 %v1098, %v1108
        %v1111 = vadd.f32 %v1099, %v1109
        %s1112 = sld [smem:[#allocation2 + $0x5e]]
        %v1113 = vstv %s1112
        %v1114 = vmul.f32 %v1113, %v355
        %v1115 = vmul.f32 %v1113, %v356
        %v1116 = vadd.f32 %v1104, %v1114
        %v1117 = vadd.f32 %v1105, %v1115
        %s1118 = sld [smem:[#allocation2 + $0x2e]]
        %v1119 = vstv %s1118
        %v1120 = vmul.f32 %v1119, %v383
        %v1121 = vmul.f32 %v1119, %v384
        %v1122 = vadd.f32 %v1110, %v1120
        %v1123 = vadd.f32 %v1111, %v1121
        %s1124 = sld [smem:[#allocation2 + $0x5f]]
        %v1125 = vstv %s1124
        %v1126 = vmul.f32 %v1125, %v385
        %v1127 = vmul.f32 %v1125, %v386
        %v1128 = vadd.f32 %v1116, %v1126
        %v1129 = vadd.f32 %v1117, %v1127
        %s1130 = sld [smem:[#allocation2 + $0x2f]]
        %v1131 = vstv %s1130
        %v1132 = vmul.f32 %v1131, %v413
        %v1133 = vmul.f32 %v1131, %v414
        %v1134 = vadd.f32 %v1122, %v1132
        %v1135 = vadd.f32 %v1123, %v1133
        %s1136 = sld [smem:[#allocation2 + $0x60]]
        %v1137 = vstv %s1136
        %v1138 = vmul.f32 %v1137, %v415
        %v1139 = vmul.f32 %v1137, %v416
        %v1140 = vadd.f32 %v1128, %v1138
        %v1141 = vadd.f32 %v1129, %v1139
        %s1142 = sld [smem:[#allocation2 + $0x30]]
        %v1143 = vstv %s1142
        %v1144 = vmul.f32 %v1143, %v443
        %v1145 = vmul.f32 %v1143, %v444
        %v1146 = vadd.f32 %v1134, %v1144
        %v1147 = vadd.f32 %v1135, %v1145
        %s1148 = sld [smem:[#allocation2 + $0x61]]
        %v1149 = vstv %s1148
        %v1150 = vmul.f32 %v1149, %v445
        %v1151 = vmul.f32 %v1149, %v446
        %v1152 = vadd.f32 %v1140, %v1150
        %v1153 = vadd.f32 %v1141, %v1151
        %v1154 = vadd.f32 %v1146, %v1152
        %v1155 = vadd.f32 %v1147, %v1153
        %s1156 = scalar_lea.vmem [#allocation6], 21
        %v1157 = vld [vmem:[%s1156] ss:$8 sm:$0x3]
        %1158 = vrot.lane.b32.xlu0 %v1154, 80
        %v1159 = vpop.permute.xlu0 %1158
        %1160 = vrot.lane.b32.xlu0 %v1155, 80
        %v1161 = vpop.permute.xlu0 %1160
        %vm1162 = vcmp.lt.s32.totalorder %v255, 80
        %v1163 = vsel %vm1162, %v1159, %v1161
        %v1164 = vsel %vm1162, %v1161, %v1159
        %v1166 = vlaneseq
        %v1167 = vshrl.u32 %v1166, 7
        %v1168 = vsub.s32 0, %v1167
        %v1169 = vrot.slane %v1157, %v1168
        %v1170 = vlaneseq
        %v1171 = vshrl.u32 %v1170, 7
        %v1172 = vsub.s32 1, %v1171
        %v1173 = vrot.slane %v1157, %v1172
        %v1176 = vmul.f32 %v1163, %v1169
        %v1177 = vmul.f32 %v1164, %v1173
        %v1178 = vadd.f32 %v1072, %v1176
        %v1179 = vadd.f32 %v1073, %v1177
        %v1180 = vxor.u32 %v1178, 2147483648
        %v1181 = vxor.u32 %v1179, 2147483648
        %v1182 = vmul.f32 %v1180, 1.442695
        %v1183 = vpow.pop %v1182
        %v1184 = vmul.f32 %v1181, 1.442695
        %v1185 = vpow.pop %v1184
        %v1186 = vadd.f32 %v1183, 1.0
        %v1187 = vadd.f32 %v1185, 1.0
        %v1188 = vrcp.pop %v1186
        %v1189 = vmul.f32 1.0, %v1188
        %v1190 = vrcp.pop %v1187
        %v1191 = vmul.f32 1.0, %v1190
        %v1192 = vlaneseq
        %v1193 = vshrl.u32 %v1192, 7
        %v1194 = vsub.s32 0, %v1193
        %v1195 = vrot.slane %v1189, %v1194
        %v1196 = vlaneseq
        %v1197 = vshrl.u32 %v1196, 7
        %v1198 = vsub.s32 0, %v1197
        %v1199 = vrot.slane %v1191, %v1198
        %v1202 = vcombine.low %v1195, %v1199
        %v1204 = vmul.f32 %v214, %v1202
        %1205 = vst [vmem:[%s213] sm:$0xff] %v1204
        %s1206 = sand.u32 %s98, 1
        %s1207 = scalar_lea.sflag [#allocation4], %s1206
        %s1208 = sand.u32 %s98, 1
        %s1209 = smul.addr %s1208, 8
        %s1210 = scalar_lea.vmem [#allocation9], %s1209
        // Predicated region
        $region45: #{tpu_custom_call.1} parent=31 // pred_check
          %p1211 = pneg %p108
        $region46: #{tpu_custom_call.1} parent=31 // pred_check_branch
          %1213 = sbr.rel (%p1211) target = $region48
        $region47: #{tpu_custom_call.1} parent=31 // pred_region
          %s1215 = ssub.s32 128, 128
          %1216 = vsyncadd %s1207, %s1215
          %s1217 = smul.addr %s22, 2
          %s1218 = smul.addr %s1217, 64
          %s1219 = scalar_lea.hbm %s3, %s1218
          %s1221 = sshll.u32 %s1210, 4
          %s1222 = int_to_ptr.vmem [resolvable:$true] %s1221
          %1224 = dma.vmem_to_hbm [thread:$0]  %s1222, 128, %s1219, %s1207
        $region48: #{tpu_custom_call.1} parent=31 // pred_fallthru
          _
      $region32: #{tpu_custom_call.1} parent=5 // pred_fallthru
        _
      %p1225 = scmp.le.s32.totalorder 2, %s17
      // Predicated region
      $region49: #{tpu_custom_call.1} parent=5 // pred_check
        %p1226 = pneg %p1225
      $region50: #{tpu_custom_call.1} parent=5 // pred_check_branch
        %1228 = sbr.rel (%p1226) target = $region52
      $region51: #{tpu_custom_call.1} parent=5 // pred_region
        %s1229 = ssub.s32 %s17, 2
        // Predicated region
        $region53: #{tpu_custom_call.1} parent=51 // pred_check
          %p1230 = pneg %p114
        $region54: #{tpu_custom_call.1} parent=51 // pred_check_branch
          %1232 = sbr.rel (%p1230) target = $region56
        $region55: #{tpu_custom_call.1} parent=51 // pred_region
          %s1233 = sand.u32 %s99, 1
          %s1234 = scalar_lea.sflag [#allocation4], %s1233
          %s1235 = sand.u32 %s99, 1
          %s1236 = smul.addr %s1235, 8
          %s1237 = scalar_lea.vmem [#allocation9], %s1236
          %1238 = dma.done %s1234, 128
        $region56: #{tpu_custom_call.1} parent=51 // pred_fallthru
          _
      $region52: #{tpu_custom_call.1} parent=5 // pred_fallthru
        _
    $region6: #{tpu_custom_call.1} parent=1 // loop_footer
      %s21 = sadd.s32 1, %s17
    $region7: #{tpu_custom_call.1} parent=1 // loop_footer_branch
      %16 = sbr.rel target = $region3
    $region8: #{tpu_custom_call.1} parent=1 // loop_exit
      _
    %1239 = vsyncpa [#allocation3], 1
    %s1240 = scalar_lea.sflag [#allocation3], 1
    %1241 = vsyncpa %s1240, 1
    %1242 = vsyncpa [#allocation8], 1
    %s1243 = scalar_lea.sflag [#allocation8], 1
    %1244 = vsyncpa %s1243, 1
    %1245 = vsyncpa [#allocation4], 1
    %s1246 = scalar_lea.sflag [#allocation4], 1
    %1247 = vsyncpa %s1246, 1
    %1248 = vsyncpa [#allocation5], 1
    %s1249 = scalar_lea.sflag [#allocation5], 1
    %1250 = vsyncpa %s1249, 1

</llo_original>
